<compile_context>
chip_gen: v6e
topology: v6e:2x2x1
jax: 0.10.0
libtpu: 0.0.40
codegen_flags: <defaults>
</compile_context>

<pallas_src>
import functools

import numpy as np
import jax
import jax.numpy as jnp
from jax.experimental import pallas as pl
from jax.experimental.pallas import tpu as pltpu

KH, KW = 3, 3
CIN, COUT = 3, 3
PAD = 1


def _conv3x3_lane_dense_kernel(w_ref, m_ref, x_ref, o_ref, *, W):
    # w_ref: (81,) f32 SMEM, row-major over [co, ci, kh, kw] (OIHW flattened)
    # m_ref: (9, H*W) f32 VMEM, per-tap boundary masks (tap = (dh+1)*3 + (dw+1))
    # x_ref: (NB, CIN,  H*W) f32 VMEM input block (lane-dense last axis)
    # o_ref: (NB, COUT, H*W) f32 VMEM output block
    HW = x_ref.shape[2]

    # --- hoisted invariants: all 81 weight scalars read once from SMEM ---------
    wts = [w_ref[i] for i in range(COUT * CIN * KH * KW)]

    # --- 27 shifted-window FMAs on the VPU; shifts on the XLU via pltpu.roll ---
    accs = [None] * COUT              # one (NB, HW) f32 accumulator per channel
    for ci in range(CIN):
        x_ci = x_ref[:, ci, :]                               # (NB, HW), lane-dense
        for dh in (-1, 0, 1):
            for dw in (-1, 0, 1):
                if dh == 0 and dw == 0:
                    win = x_ci
                else:
                    off = dh * W + dw
                    # win[p] = x_ci[(p + off) mod HW]; row/edge wrap is zeroed by
                    # the precomputed per-tap boundary mask.
                    win = pltpu.roll(x_ci, (-off) % HW, axis=1)
                    t = (dh + 1) * 3 + (dw + 1)
                    win = win * m_ref[t:t + 1, :]            # (1, HW) sublane bcast
                kh, kw = dh + 1, dw + 1
                for co in range(COUT):
                    wv = wts[((co * CIN + ci) * KH + kh) * KW + kw]   # SMEM scalar
                    tap = wv * win
                    accs[co] = tap if accs[co] is None else accs[co] + tap

    # One lane-dense store per output channel (single store pass, v5e-friendly).
    for co in range(COUT):
        o_ref[:, co, :] = accs[co].astype(o_ref.dtype)


def _build_tap_masks(H, W):
    """(9, H*W) f32 masks: mask[t][p]==1 iff output position p has a valid
    (in-bounds) neighbor at offset (dh, dw) = (t//3 - 1, t%3 - 1)."""
    hw = H * W
    r = np.arange(hw) // W
    c = np.arange(hw) % W
    masks = np.empty((9, hw), dtype=np.float32)
    for dh in (-1, 0, 1):
        for dw in (-1, 0, 1):
            ok = np.ones(hw, dtype=bool)
            if dh == -1:
                ok &= r >= 1
            if dh == +1:
                ok &= r <= H - 2
            if dw == -1:
                ok &= c >= 1
            if dw == +1:
                ok &= c <= W - 2
            masks[(dh + 1) * 3 + (dw + 1)] = ok
    return jnp.asarray(masks)


def _pick_images_per_block(n, c, hw, dtype_bytes=4):
    """Images per grid step: big enough to amortize ~0.35us per-step overhead,
    small enough to stay well under scoped VMEM, and leaving >= 2 grid steps
    (for v7x's two TensorCores) whenever n >= 2."""
    per_image = c * hw * dtype_bytes
    budget = 8 << 20                               # in+out, double-buffered
    nb = max(1, budget // (4 * per_image))
    if n >= 2:
        nb = min(nb, max(1, n // 2))
    nb = min(nb, n)
    while n % nb:                                  # blocks must tile n exactly
        nb -= 1
    return max(nb, 1)


def proxy_conv_forward(x_nchw, w_oihw):
    """x_nchw: (N, 3, H, W) float32 (PyTorch layout); w_oihw: (3, 3, 3, 3).

    Semantics identical to nn.Conv2d(3, 3, 3, stride=1, padding=1, bias=False).
    """
    N, C, H, W = x_nchw.shape
    assert C == CIN
    HW = H * W

    x_flat = x_nchw.reshape(N, CIN, HW)            # contiguous -> free reshape
    w_flat = w_oihw.astype(jnp.float32).reshape(-1)
    masks = _build_tap_masks(H, W)

    nb = _pick_images_per_block(N, CIN, HW)
    grid = (N // nb,)

    out = pl.pallas_call(
        functools.partial(_conv3x3_lane_dense_kernel, W=W),
        out_shape=jax.ShapeDtypeStruct((N, COUT, HW), x_nchw.dtype),
        grid_spec=pltpu.PrefetchScalarGridSpec(
            num_scalar_prefetch=0,
            grid=grid,
            in_specs=[
                pl.BlockSpec(memory_space=pltpu.MemorySpace.SMEM),   # (81,) weights
                pl.BlockSpec((9, HW), lambda n: (0, 0)),             # boundary masks
                pl.BlockSpec((nb, CIN, HW), lambda n: (n, 0, 0)),    # image block
            ],
            out_specs=pl.BlockSpec((nb, COUT, HW), lambda n: (n, 0, 0)),
        ),
        compiler_params=pltpu.CompilerParams(
            dimension_semantics=("parallel",)),
    )(w_flat, masks, x_flat)

    return out.reshape(N, COUT, H, W)


def make_proxy_weights():
    """Deterministic weights matching ProxyConvModule.__init__ (OIHW delta kernel)."""
    w = jnp.zeros((COUT, CIN, KH, KW), dtype=jnp.float32)
    for o in range(COUT):
        w = w.at[o, o, 1, 1].set(1.0)
    return w


if __name__ == "__main__":
    key = jax.random.PRNGKey(0)
    x = jax.random.normal(key, (2, 3, 16, 16), dtype=jnp.float32)  # NCHW like PyTorch

    # 1) The module's fixed delta kernel -> conv is an identity map.
    w = make_proxy_weights()
    y = jax.block_until_ready(proxy_conv_forward(x, w))
    assert y.shape == x.shape
    assert jnp.allclose(y, x, atol=1e-5), "conv with delta kernel should be identity"

    # 2) General 3x3 conv check against XLA's conv with random weights.
    w_rand = jax.random.normal(jax.random.PRNGKey(1), (COUT, CIN, KH, KW), jnp.float32)
    y2 = jax.block_until_ready(proxy_conv_forward(x, w_rand))
    ref = jax.lax.conv_general_dilated(
        x, w_rand, window_strides=(1, 1), padding=((PAD, PAD), (PAD, PAD)),
        dimension_numbers=("NCHW", "OIHW", "NCHW"),
        precision=jax.lax.Precision.HIGHEST)
    assert jnp.allclose(y2, ref, atol=1e-4, rtol=1e-4), "mismatch vs lax conv reference"

    print("KERNEL_OK")
</pallas_src>

<mosaic_0001>
module attributes {stable_mosaic.version = 11 : i64} {
  func.func @_conv3x3_lane_dense_kernel(%arg0: i32, %arg1: memref<81xf32, #tpu.memory_space<smem>>, %arg2: memref<9x256xf32, #tpu.memory_space<vmem>>, %arg3: memref<1x3x256xf32, #tpu.memory_space<vmem>>, %arg4: memref<1x3x256xf32, #tpu.memory_space<vmem>>) attributes {dimension_semantics = [#tpu.dimension_semantics<parallel>], iteration_bounds = array<i64: 2>, scalar_prefetch = 0 : i64, scratch_operands = 0 : i64, tpu.core_type = #tpu.core_type<tc>, window_params = [{transform_indices = @transform_0, window_bounds = array<i64: 81>}, {pipeline_mode = #tpu.pipeline_mode<synchronous>, transform_indices = @transform_1, window_bounds = array<i64: 9, 256>}, {transform_indices = @transform_2, window_bounds = array<i64: 1, 3, 256>}, {transform_indices = @transform_3, window_bounds = array<i64: 1, 3, 256>}]} {
    %c0 = arith.constant 0 : index
    %0 = memref.load %arg1[%c0] : memref<81xf32, #tpu.memory_space<smem>>
    %c1 = arith.constant 1 : index
    %1 = memref.load %arg1[%c1] : memref<81xf32, #tpu.memory_space<smem>>
    %c2 = arith.constant 2 : index
    %2 = memref.load %arg1[%c2] : memref<81xf32, #tpu.memory_space<smem>>
    %c3 = arith.constant 3 : index
    %3 = memref.load %arg1[%c3] : memref<81xf32, #tpu.memory_space<smem>>
    %c4 = arith.constant 4 : index
    %4 = memref.load %arg1[%c4] : memref<81xf32, #tpu.memory_space<smem>>
    %c5 = arith.constant 5 : index
    %5 = memref.load %arg1[%c5] : memref<81xf32, #tpu.memory_space<smem>>
    %c6 = arith.constant 6 : index
    %6 = memref.load %arg1[%c6] : memref<81xf32, #tpu.memory_space<smem>>
    %c7 = arith.constant 7 : index
    %7 = memref.load %arg1[%c7] : memref<81xf32, #tpu.memory_space<smem>>
    %c8 = arith.constant 8 : index
    %8 = memref.load %arg1[%c8] : memref<81xf32, #tpu.memory_space<smem>>
    %c9 = arith.constant 9 : index
    %9 = memref.load %arg1[%c9] : memref<81xf32, #tpu.memory_space<smem>>
    %c10 = arith.constant 10 : index
    %10 = memref.load %arg1[%c10] : memref<81xf32, #tpu.memory_space<smem>>
    %c11 = arith.constant 11 : index
    %11 = memref.load %arg1[%c11] : memref<81xf32, #tpu.memory_space<smem>>
    %c12 = arith.constant 12 : index
    %12 = memref.load %arg1[%c12] : memref<81xf32, #tpu.memory_space<smem>>
    %c13 = arith.constant 13 : index
    %13 = memref.load %arg1[%c13] : memref<81xf32, #tpu.memory_space<smem>>
    %c14 = arith.constant 14 : index
    %14 = memref.load %arg1[%c14] : memref<81xf32, #tpu.memory_space<smem>>
    %c15 = arith.constant 15 : index
    %15 = memref.load %arg1[%c15] : memref<81xf32, #tpu.memory_space<smem>>
    %c16 = arith.constant 16 : index
    %16 = memref.load %arg1[%c16] : memref<81xf32, #tpu.memory_space<smem>>
    %c17 = arith.constant 17 : index
    %17 = memref.load %arg1[%c17] : memref<81xf32, #tpu.memory_space<smem>>
    %c18 = arith.constant 18 : index
    %18 = memref.load %arg1[%c18] : memref<81xf32, #tpu.memory_space<smem>>
    %c19 = arith.constant 19 : index
    %19 = memref.load %arg1[%c19] : memref<81xf32, #tpu.memory_space<smem>>
    %c20 = arith.constant 20 : index
    %20 = memref.load %arg1[%c20] : memref<81xf32, #tpu.memory_space<smem>>
    %c21 = arith.constant 21 : index
    %21 = memref.load %arg1[%c21] : memref<81xf32, #tpu.memory_space<smem>>
    %c22 = arith.constant 22 : index
    %22 = memref.load %arg1[%c22] : memref<81xf32, #tpu.memory_space<smem>>
    %c23 = arith.constant 23 : index
    %23 = memref.load %arg1[%c23] : memref<81xf32, #tpu.memory_space<smem>>
    %c24 = arith.constant 24 : index
    %24 = memref.load %arg1[%c24] : memref<81xf32, #tpu.memory_space<smem>>
    %c25 = arith.constant 25 : index
    %25 = memref.load %arg1[%c25] : memref<81xf32, #tpu.memory_space<smem>>
    %c26 = arith.constant 26 : index
    %26 = memref.load %arg1[%c26] : memref<81xf32, #tpu.memory_space<smem>>
    %c27 = arith.constant 27 : index
    %27 = memref.load %arg1[%c27] : memref<81xf32, #tpu.memory_space<smem>>
    %c28 = arith.constant 28 : index
    %28 = memref.load %arg1[%c28] : memref<81xf32, #tpu.memory_space<smem>>
    %c29 = arith.constant 29 : index
    %29 = memref.load %arg1[%c29] : memref<81xf32, #tpu.memory_space<smem>>
    %c30 = arith.constant 30 : index
    %30 = memref.load %arg1[%c30] : memref<81xf32, #tpu.memory_space<smem>>
    %c31 = arith.constant 31 : index
    %31 = memref.load %arg1[%c31] : memref<81xf32, #tpu.memory_space<smem>>
    %c32 = arith.constant 32 : index
    %32 = memref.load %arg1[%c32] : memref<81xf32, #tpu.memory_space<smem>>
    %c33 = arith.constant 33 : index
    %33 = memref.load %arg1[%c33] : memref<81xf32, #tpu.memory_space<smem>>
    %c34 = arith.constant 34 : index
    %34 = memref.load %arg1[%c34] : memref<81xf32, #tpu.memory_space<smem>>
    %c35 = arith.constant 35 : index
    %35 = memref.load %arg1[%c35] : memref<81xf32, #tpu.memory_space<smem>>
    %c36 = arith.constant 36 : index
    %36 = memref.load %arg1[%c36] : memref<81xf32, #tpu.memory_space<smem>>
    %c37 = arith.constant 37 : index
    %37 = memref.load %arg1[%c37] : memref<81xf32, #tpu.memory_space<smem>>
    %c38 = arith.constant 38 : index
    %38 = memref.load %arg1[%c38] : memref<81xf32, #tpu.memory_space<smem>>
    %c39 = arith.constant 39 : index
    %39 = memref.load %arg1[%c39] : memref<81xf32, #tpu.memory_space<smem>>
    %c40 = arith.constant 40 : index
    %40 = memref.load %arg1[%c40] : memref<81xf32, #tpu.memory_space<smem>>
    %c41 = arith.constant 41 : index
    %41 = memref.load %arg1[%c41] : memref<81xf32, #tpu.memory_space<smem>>
    %c42 = arith.constant 42 : index
    %42 = memref.load %arg1[%c42] : memref<81xf32, #tpu.memory_space<smem>>
    %c43 = arith.constant 43 : index
    %43 = memref.load %arg1[%c43] : memref<81xf32, #tpu.memory_space<smem>>
    %c44 = arith.constant 44 : index
    %44 = memref.load %arg1[%c44] : memref<81xf32, #tpu.memory_space<smem>>
    %c45 = arith.constant 45 : index
    %45 = memref.load %arg1[%c45] : memref<81xf32, #tpu.memory_space<smem>>
    %c46 = arith.constant 46 : index
    %46 = memref.load %arg1[%c46] : memref<81xf32, #tpu.memory_space<smem>>
    %c47 = arith.constant 47 : index
    %47 = memref.load %arg1[%c47] : memref<81xf32, #tpu.memory_space<smem>>
    %c48 = arith.constant 48 : index
    %48 = memref.load %arg1[%c48] : memref<81xf32, #tpu.memory_space<smem>>
    %c49 = arith.constant 49 : index
    %49 = memref.load %arg1[%c49] : memref<81xf32, #tpu.memory_space<smem>>
    %c50 = arith.constant 50 : index
    %50 = memref.load %arg1[%c50] : memref<81xf32, #tpu.memory_space<smem>>
    %c51 = arith.constant 51 : index
    %51 = memref.load %arg1[%c51] : memref<81xf32, #tpu.memory_space<smem>>
    %c52 = arith.constant 52 : index
    %52 = memref.load %arg1[%c52] : memref<81xf32, #tpu.memory_space<smem>>
    %c53 = arith.constant 53 : index
    %53 = memref.load %arg1[%c53] : memref<81xf32, #tpu.memory_space<smem>>
    %c54 = arith.constant 54 : index
    %54 = memref.load %arg1[%c54] : memref<81xf32, #tpu.memory_space<smem>>
    %c55 = arith.constant 55 : index
    %55 = memref.load %arg1[%c55] : memref<81xf32, #tpu.memory_space<smem>>
    %c56 = arith.constant 56 : index
    %56 = memref.load %arg1[%c56] : memref<81xf32, #tpu.memory_space<smem>>
    %c57 = arith.constant 57 : index
    %57 = memref.load %arg1[%c57] : memref<81xf32, #tpu.memory_space<smem>>
    %c58 = arith.constant 58 : index
    %58 = memref.load %arg1[%c58] : memref<81xf32, #tpu.memory_space<smem>>
    %c59 = arith.constant 59 : index
    %59 = memref.load %arg1[%c59] : memref<81xf32, #tpu.memory_space<smem>>
    %c60 = arith.constant 60 : index
    %60 = memref.load %arg1[%c60] : memref<81xf32, #tpu.memory_space<smem>>
    %c61 = arith.constant 61 : index
    %61 = memref.load %arg1[%c61] : memref<81xf32, #tpu.memory_space<smem>>
    %c62 = arith.constant 62 : index
    %62 = memref.load %arg1[%c62] : memref<81xf32, #tpu.memory_space<smem>>
    %c63 = arith.constant 63 : index
    %63 = memref.load %arg1[%c63] : memref<81xf32, #tpu.memory_space<smem>>
    %c64 = arith.constant 64 : index
    %64 = memref.load %arg1[%c64] : memref<81xf32, #tpu.memory_space<smem>>
    %c65 = arith.constant 65 : index
    %65 = memref.load %arg1[%c65] : memref<81xf32, #tpu.memory_space<smem>>
    %c66 = arith.constant 66 : index
    %66 = memref.load %arg1[%c66] : memref<81xf32, #tpu.memory_space<smem>>
    %c67 = arith.constant 67 : index
    %67 = memref.load %arg1[%c67] : memref<81xf32, #tpu.memory_space<smem>>
    %c68 = arith.constant 68 : index
    %68 = memref.load %arg1[%c68] : memref<81xf32, #tpu.memory_space<smem>>
    %c69 = arith.constant 69 : index
    %69 = memref.load %arg1[%c69] : memref<81xf32, #tpu.memory_space<smem>>
    %c70 = arith.constant 70 : index
    %70 = memref.load %arg1[%c70] : memref<81xf32, #tpu.memory_space<smem>>
    %c71 = arith.constant 71 : index
    %71 = memref.load %arg1[%c71] : memref<81xf32, #tpu.memory_space<smem>>
    %c72 = arith.constant 72 : index
    %72 = memref.load %arg1[%c72] : memref<81xf32, #tpu.memory_space<smem>>
    %c73 = arith.constant 73 : index
    %73 = memref.load %arg1[%c73] : memref<81xf32, #tpu.memory_space<smem>>
    %c74 = arith.constant 74 : index
    %74 = memref.load %arg1[%c74] : memref<81xf32, #tpu.memory_space<smem>>
    %c75 = arith.constant 75 : index
    %75 = memref.load %arg1[%c75] : memref<81xf32, #tpu.memory_space<smem>>
    %c76 = arith.constant 76 : index
    %76 = memref.load %arg1[%c76] : memref<81xf32, #tpu.memory_space<smem>>
    %c77 = arith.constant 77 : index
    %77 = memref.load %arg1[%c77] : memref<81xf32, #tpu.memory_space<smem>>
    %c78 = arith.constant 78 : index
    %78 = memref.load %arg1[%c78] : memref<81xf32, #tpu.memory_space<smem>>
    %c79 = arith.constant 79 : index
    %79 = memref.load %arg1[%c79] : memref<81xf32, #tpu.memory_space<smem>>
    %c80 = arith.constant 80 : index
    %80 = memref.load %arg1[%c80] : memref<81xf32, #tpu.memory_space<smem>>
    %c0_0 = arith.constant 0 : index
    %c0_1 = arith.constant 0 : index
    %c0_2 = arith.constant 0 : index
    %81 = vector.load %arg3[%c0_0, %c0_1, %c0_2] : memref<1x3x256xf32, #tpu.memory_space<vmem>>, vector<1x1x256xf32>
    %82 = vector.shape_cast %81 : vector<1x1x256xf32> to vector<1x256xf32>
    %c17_i32 = arith.constant 17 : i32
    %83 = tpu.dynamic_rotate %82 by %c17_i32 dim 1 : vector<1x256xf32>, i32 -> vector<1x256xf32>
    %c0_3 = arith.constant 0 : index
    %c0_4 = arith.constant 0 : index
    %84 = vector.load %arg2[%c0_3, %c0_4] : memref<9x256xf32, #tpu.memory_space<vmem>>, vector<1x256xf32>
    %85 = arith.mulf %83, %84 : vector<1x256xf32>
    %86 = vector.broadcast %0 : f32 to vector<1x256xf32>
    %87 = arith.mulf %86, %85 : vector<1x256xf32>
    %88 = vector.broadcast %27 : f32 to vector<1x256xf32>
    %89 = arith.mulf %88, %85 : vector<1x256xf32>
    %90 = vector.broadcast %54 : f32 to vector<1x256xf32>
    %91 = arith.mulf %90, %85 : vector<1x256xf32>
    %c16_i32 = arith.constant 16 : i32
    %92 = tpu.dynamic_rotate %82 by %c16_i32 dim 1 : vector<1x256xf32>, i32 -> vector<1x256xf32>
    %c1_5 = arith.constant 1 : index
    %c0_6 = arith.constant 0 : index
    %93 = vector.load %arg2[%c1_5, %c0_6] : memref<9x256xf32, #tpu.memory_space<vmem>>, vector<1x256xf32>
    %94 = arith.mulf %92, %93 : vector<1x256xf32>
    %95 = vector.broadcast %1 : f32 to vector<1x256xf32>
    %96 = arith.mulf %95, %94 : vector<1x256xf32>
    %97 = arith.addf %87, %96 : vector<1x256xf32>
    %98 = vector.broadcast %28 : f32 to vector<1x256xf32>
    %99 = arith.mulf %98, %94 : vector<1x256xf32>
    %100 = arith.addf %89, %99 : vector<1x256xf32>
    %101 = vector.broadcast %55 : f32 to vector<1x256xf32>
    %102 = arith.mulf %101, %94 : vector<1x256xf32>
    %103 = arith.addf %91, %102 : vector<1x256xf32>
    %c15_i32 = arith.constant 15 : i32
    %104 = tpu.dynamic_rotate %82 by %c15_i32 dim 1 : vector<1x256xf32>, i32 -> vector<1x256xf32>
    %c2_7 = arith.constant 2 : index
    %c0_8 = arith.constant 0 : index
    %105 = vector.load %arg2[%c2_7, %c0_8] : memref<9x256xf32, #tpu.memory_space<vmem>>, vector<1x256xf32>
    %106 = arith.mulf %104, %105 : vector<1x256xf32>
    %107 = vector.broadcast %2 : f32 to vector<1x256xf32>
    %108 = arith.mulf %107, %106 : vector<1x256xf32>
    %109 = arith.addf %97, %108 : vector<1x256xf32>
    %110 = vector.broadcast %29 : f32 to vector<1x256xf32>
    %111 = arith.mulf %110, %106 : vector<1x256xf32>
    %112 = arith.addf %100, %111 : vector<1x256xf32>
    %113 = vector.broadcast %56 : f32 to vector<1x256xf32>
    %114 = arith.mulf %113, %106 : vector<1x256xf32>
    %115 = arith.addf %103, %114 : vector<1x256xf32>
    %c1_i32 = arith.constant 1 : i32
    %116 = tpu.dynamic_rotate %82 by %c1_i32 dim 1 : vector<1x256xf32>, i32 -> vector<1x256xf32>
    %c3_9 = arith.constant 3 : index
    %c0_10 = arith.constant 0 : index
    %117 = vector.load %arg2[%c3_9, %c0_10] : memref<9x256xf32, #tpu.memory_space<vmem>>, vector<1x256xf32>
    %118 = arith.mulf %116, %117 : vector<1x256xf32>
    %119 = vector.broadcast %3 : f32 to vector<1x256xf32>
    %120 = arith.mulf %119, %118 : vector<1x256xf32>
    %121 = arith.addf %109, %120 : vector<1x256xf32>
    %122 = vector.broadcast %30 : f32 to vector<1x256xf32>
    %123 = arith.mulf %122, %118 : vector<1x256xf32>
    %124 = arith.addf %112, %123 : vector<1x256xf32>
    %125 = vector.broadcast %57 : f32 to vector<1x256xf32>
    %126 = arith.mulf %125, %118 : vector<1x256xf32>
    %127 = arith.addf %115, %126 : vector<1x256xf32>
    %128 = vector.broadcast %4 : f32 to vector<1x256xf32>
    %129 = arith.mulf %128, %82 : vector<1x256xf32>
    %130 = arith.addf %121, %129 : vector<1x256xf32>
    %131 = vector.broadcast %31 : f32 to vector<1x256xf32>
    %132 = arith.mulf %131, %82 : vector<1x256xf32>
    %133 = arith.addf %124, %132 : vector<1x256xf32>
    %134 = vector.broadcast %58 : f32 to vector<1x256xf32>
    %135 = arith.mulf %134, %82 : vector<1x256xf32>
    %136 = arith.addf %127, %135 : vector<1x256xf32>
    %c255_i32 = arith.constant 255 : i32
    %137 = tpu.dynamic_rotate %82 by %c255_i32 dim 1 : vector<1x256xf32>, i32 -> vector<1x256xf32>
    %c5_11 = arith.constant 5 : index
    %c0_12 = arith.constant 0 : index
    %138 = vector.load %arg2[%c5_11, %c0_12] : memref<9x256xf32, #tpu.memory_space<vmem>>, vector<1x256xf32>
    %139 = arith.mulf %137, %138 : vector<1x256xf32>
    %140 = vector.broadcast %5 : f32 to vector<1x256xf32>
    %141 = arith.mulf %140, %139 : vector<1x256xf32>
    %142 = arith.addf %130, %141 : vector<1x256xf32>
    %143 = vector.broadcast %32 : f32 to vector<1x256xf32>
    %144 = arith.mulf %143, %139 : vector<1x256xf32>
    %145 = arith.addf %133, %144 : vector<1x256xf32>
    %146 = vector.broadcast %59 : f32 to vector<1x256xf32>
    %147 = arith.mulf %146, %139 : vector<1x256xf32>
    %148 = arith.addf %136, %147 : vector<1x256xf32>
    %c241_i32 = arith.constant 241 : i32
    %149 = tpu.dynamic_rotate %82 by %c241_i32 dim 1 : vector<1x256xf32>, i32 -> vector<1x256xf32>
    %c6_13 = arith.constant 6 : index
    %c0_14 = arith.constant 0 : index
    %150 = vector.load %arg2[%c6_13, %c0_14] : memref<9x256xf32, #tpu.memory_space<vmem>>, vector<1x256xf32>
    %151 = arith.mulf %149, %150 : vector<1x256xf32>
    %152 = vector.broadcast %6 : f32 to vector<1x256xf32>
    %153 = arith.mulf %152, %151 : vector<1x256xf32>
    %154 = arith.addf %142, %153 : vector<1x256xf32>
    %155 = vector.broadcast %33 : f32 to vector<1x256xf32>
    %156 = arith.mulf %155, %151 : vector<1x256xf32>
    %157 = arith.addf %145, %156 : vector<1x256xf32>
    %158 = vector.broadcast %60 : f32 to vector<1x256xf32>
    %159 = arith.mulf %158, %151 : vector<1x256xf32>
    %160 = arith.addf %148, %159 : vector<1x256xf32>
    %c240_i32 = arith.constant 240 : i32
    %161 = tpu.dynamic_rotate %82 by %c240_i32 dim 1 : vector<1x256xf32>, i32 -> vector<1x256xf32>
    %c7_15 = arith.constant 7 : index
    %c0_16 = arith.constant 0 : index
    %162 = vector.load %arg2[%c7_15, %c0_16] : memref<9x256xf32, #tpu.memory_space<vmem>>, vector<1x256xf32>
    %163 = arith.mulf %161, %162 : vector<1x256xf32>
    %164 = vector.broadcast %7 : f32 to vector<1x256xf32>
    %165 = arith.mulf %164, %163 : vector<1x256xf32>
    %166 = arith.addf %154, %165 : vector<1x256xf32>
    %167 = vector.broadcast %34 : f32 to vector<1x256xf32>
    %168 = arith.mulf %167, %163 : vector<1x256xf32>
    %169 = arith.addf %157, %168 : vector<1x256xf32>
    %170 = vector.broadcast %61 : f32 to vector<1x256xf32>
    %171 = arith.mulf %170, %163 : vector<1x256xf32>
    %172 = arith.addf %160, %171 : vector<1x256xf32>
    %c239_i32 = arith.constant 239 : i32
    %173 = tpu.dynamic_rotate %82 by %c239_i32 dim 1 : vector<1x256xf32>, i32 -> vector<1x256xf32>
    %c8_17 = arith.constant 8 : index
    %c0_18 = arith.constant 0 : index
    %174 = vector.load %arg2[%c8_17, %c0_18] : memref<9x256xf32, #tpu.memory_space<vmem>>, vector<1x256xf32>
    %175 = arith.mulf %173, %174 : vector<1x256xf32>
    %176 = vector.broadcast %8 : f32 to vector<1x256xf32>
    %177 = arith.mulf %176, %175 : vector<1x256xf32>
    %178 = arith.addf %166, %177 : vector<1x256xf32>
    %179 = vector.broadcast %35 : f32 to vector<1x256xf32>
    %180 = arith.mulf %179, %175 : vector<1x256xf32>
    %181 = arith.addf %169, %180 : vector<1x256xf32>
    %182 = vector.broadcast %62 : f32 to vector<1x256xf32>
    %183 = arith.mulf %182, %175 : vector<1x256xf32>
    %184 = arith.addf %172, %183 : vector<1x256xf32>
    %c0_19 = arith.constant 0 : index
    %c1_20 = arith.constant 1 : index
    %c0_21 = arith.constant 0 : index
    %185 = vector.load %arg3[%c0_19, %c1_20, %c0_21] : memref<1x3x256xf32, #tpu.memory_space<vmem>>, vector<1x1x256xf32>
    %186 = vector.shape_cast %185 : vector<1x1x256xf32> to vector<1x256xf32>
    %c17_i32_22 = arith.constant 17 : i32
    %187 = tpu.dynamic_rotate %186 by %c17_i32_22 dim 1 : vector<1x256xf32>, i32 -> vector<1x256xf32>
    %c0_23 = arith.constant 0 : index
    %c0_24 = arith.constant 0 : index
    %188 = vector.load %arg2[%c0_23, %c0_24] : memref<9x256xf32, #tpu.memory_space<vmem>>, vector<1x256xf32>
    %189 = arith.mulf %187, %188 : vector<1x256xf32>
    %190 = vector.broadcast %9 : f32 to vector<1x256xf32>
    %191 = arith.mulf %190, %189 : vector<1x256xf32>
    %192 = arith.addf %178, %191 : vector<1x256xf32>
    %193 = vector.broadcast %36 : f32 to vector<1x256xf32>
    %194 = arith.mulf %193, %189 : vector<1x256xf32>
    %195 = arith.addf %181, %194 : vector<1x256xf32>
    %196 = vector.broadcast %63 : f32 to vector<1x256xf32>
    %197 = arith.mulf %196, %189 : vector<1x256xf32>
    %198 = arith.addf %184, %197 : vector<1x256xf32>
    %c16_i32_25 = arith.constant 16 : i32
    %199 = tpu.dynamic_rotate %186 by %c16_i32_25 dim 1 : vector<1x256xf32>, i32 -> vector<1x256xf32>
    %c1_26 = arith.constant 1 : index
    %c0_27 = arith.constant 0 : index
    %200 = vector.load %arg2[%c1_26, %c0_27] : memref<9x256xf32, #tpu.memory_space<vmem>>, vector<1x256xf32>
    %201 = arith.mulf %199, %200 : vector<1x256xf32>
    %202 = vector.broadcast %10 : f32 to vector<1x256xf32>
    %203 = arith.mulf %202, %201 : vector<1x256xf32>
    %204 = arith.addf %192, %203 : vector<1x256xf32>
    %205 = vector.broadcast %37 : f32 to vector<1x256xf32>
    %206 = arith.mulf %205, %201 : vector<1x256xf32>
    %207 = arith.addf %195, %206 : vector<1x256xf32>
    %208 = vector.broadcast %64 : f32 to vector<1x256xf32>
    %209 = arith.mulf %208, %201 : vector<1x256xf32>
    %210 = arith.addf %198, %209 : vector<1x256xf32>
    %c15_i32_28 = arith.constant 15 : i32
    %211 = tpu.dynamic_rotate %186 by %c15_i32_28 dim 1 : vector<1x256xf32>, i32 -> vector<1x256xf32>
    %c2_29 = arith.constant 2 : index
    %c0_30 = arith.constant 0 : index
    %212 = vector.load %arg2[%c2_29, %c0_30] : memref<9x256xf32, #tpu.memory_space<vmem>>, vector<1x256xf32>
    %213 = arith.mulf %211, %212 : vector<1x256xf32>
    %214 = vector.broadcast %11 : f32 to vector<1x256xf32>
    %215 = arith.mulf %214, %213 : vector<1x256xf32>
    %216 = arith.addf %204, %215 : vector<1x256xf32>
    %217 = vector.broadcast %38 : f32 to vector<1x256xf32>
    %218 = arith.mulf %217, %213 : vector<1x256xf32>
    %219 = arith.addf %207, %218 : vector<1x256xf32>
    %220 = vector.broadcast %65 : f32 to vector<1x256xf32>
    %221 = arith.mulf %220, %213 : vector<1x256xf32>
    %222 = arith.addf %210, %221 : vector<1x256xf32>
    %c1_i32_31 = arith.constant 1 : i32
    %223 = tpu.dynamic_rotate %186 by %c1_i32_31 dim 1 : vector<1x256xf32>, i32 -> vector<1x256xf32>
    %c3_32 = arith.constant 3 : index
    %c0_33 = arith.constant 0 : index
    %224 = vector.load %arg2[%c3_32, %c0_33] : memref<9x256xf32, #tpu.memory_space<vmem>>, vector<1x256xf32>
    %225 = arith.mulf %223, %224 : vector<1x256xf32>
    %226 = vector.broadcast %12 : f32 to vector<1x256xf32>
    %227 = arith.mulf %226, %225 : vector<1x256xf32>
    %228 = arith.addf %216, %227 : vector<1x256xf32>
    %229 = vector.broadcast %39 : f32 to vector<1x256xf32>
    %230 = arith.mulf %229, %225 : vector<1x256xf32>
    %231 = arith.addf %219, %230 : vector<1x256xf32>
    %232 = vector.broadcast %66 : f32 to vector<1x256xf32>
    %233 = arith.mulf %232, %225 : vector<1x256xf32>
    %234 = arith.addf %222, %233 : vector<1x256xf32>
    %235 = vector.broadcast %13 : f32 to vector<1x256xf32>
    %236 = arith.mulf %235, %186 : vector<1x256xf32>
    %237 = arith.addf %228, %236 : vector<1x256xf32>
    %238 = vector.broadcast %40 : f32 to vector<1x256xf32>
    %239 = arith.mulf %238, %186 : vector<1x256xf32>
    %240 = arith.addf %231, %239 : vector<1x256xf32>
    %241 = vector.broadcast %67 : f32 to vector<1x256xf32>
    %242 = arith.mulf %241, %186 : vector<1x256xf32>
    %243 = arith.addf %234, %242 : vector<1x256xf32>
    %c255_i32_34 = arith.constant 255 : i32
    %244 = tpu.dynamic_rotate %186 by %c255_i32_34 dim 1 : vector<1x256xf32>, i32 -> vector<1x256xf32>
    %c5_35 = arith.constant 5 : index
    %c0_36 = arith.constant 0 : index
    %245 = vector.load %arg2[%c5_35, %c0_36] : memref<9x256xf32, #tpu.memory_space<vmem>>, vector<1x256xf32>
    %246 = arith.mulf %244, %245 : vector<1x256xf32>
    %247 = vector.broadcast %14 : f32 to vector<1x256xf32>
    %248 = arith.mulf %247, %246 : vector<1x256xf32>
    %249 = arith.addf %237, %248 : vector<1x256xf32>
    %250 = vector.broadcast %41 : f32 to vector<1x256xf32>
    %251 = arith.mulf %250, %246 : vector<1x256xf32>
    %252 = arith.addf %240, %251 : vector<1x256xf32>
    %253 = vector.broadcast %68 : f32 to vector<1x256xf32>
    %254 = arith.mulf %253, %246 : vector<1x256xf32>
    %255 = arith.addf %243, %254 : vector<1x256xf32>
    %c241_i32_37 = arith.constant 241 : i32
    %256 = tpu.dynamic_rotate %186 by %c241_i32_37 dim 1 : vector<1x256xf32>, i32 -> vector<1x256xf32>
    %c6_38 = arith.constant 6 : index
    %c0_39 = arith.constant 0 : index
    %257 = vector.load %arg2[%c6_38, %c0_39] : memref<9x256xf32, #tpu.memory_space<vmem>>, vector<1x256xf32>
    %258 = arith.mulf %256, %257 : vector<1x256xf32>
    %259 = vector.broadcast %15 : f32 to vector<1x256xf32>
    %260 = arith.mulf %259, %258 : vector<1x256xf32>
    %261 = arith.addf %249, %260 : vector<1x256xf32>
    %262 = vector.broadcast %42 : f32 to vector<1x256xf32>
    %263 = arith.mulf %262, %258 : vector<1x256xf32>
    %264 = arith.addf %252, %263 : vector<1x256xf32>
    %265 = vector.broadcast %69 : f32 to vector<1x256xf32>
    %266 = arith.mulf %265, %258 : vector<1x256xf32>
    %267 = arith.addf %255, %266 : vector<1x256xf32>
    %c240_i32_40 = arith.constant 240 : i32
    %268 = tpu.dynamic_rotate %186 by %c240_i32_40 dim 1 : vector<1x256xf32>, i32 -> vector<1x256xf32>
    %c7_41 = arith.constant 7 : index
    %c0_42 = arith.constant 0 : index
    %269 = vector.load %arg2[%c7_41, %c0_42] : memref<9x256xf32, #tpu.memory_space<vmem>>, vector<1x256xf32>
    %270 = arith.mulf %268, %269 : vector<1x256xf32>
    %271 = vector.broadcast %16 : f32 to vector<1x256xf32>
    %272 = arith.mulf %271, %270 : vector<1x256xf32>
    %273 = arith.addf %261, %272 : vector<1x256xf32>
    %274 = vector.broadcast %43 : f32 to vector<1x256xf32>
    %275 = arith.mulf %274, %270 : vector<1x256xf32>
    %276 = arith.addf %264, %275 : vector<1x256xf32>
    %277 = vector.broadcast %70 : f32 to vector<1x256xf32>
    %278 = arith.mulf %277, %270 : vector<1x256xf32>
    %279 = arith.addf %267, %278 : vector<1x256xf32>
    %c239_i32_43 = arith.constant 239 : i32
    %280 = tpu.dynamic_rotate %186 by %c239_i32_43 dim 1 : vector<1x256xf32>, i32 -> vector<1x256xf32>
    %c8_44 = arith.constant 8 : index
    %c0_45 = arith.constant 0 : index
    %281 = vector.load %arg2[%c8_44, %c0_45] : memref<9x256xf32, #tpu.memory_space<vmem>>, vector<1x256xf32>
    %282 = arith.mulf %280, %281 : vector<1x256xf32>
    %283 = vector.broadcast %17 : f32 to vector<1x256xf32>
    %284 = arith.mulf %283, %282 : vector<1x256xf32>
    %285 = arith.addf %273, %284 : vector<1x256xf32>
    %286 = vector.broadcast %44 : f32 to vector<1x256xf32>
    %287 = arith.mulf %286, %282 : vector<1x256xf32>
    %288 = arith.addf %276, %287 : vector<1x256xf32>
    %289 = vector.broadcast %71 : f32 to vector<1x256xf32>
    %290 = arith.mulf %289, %282 : vector<1x256xf32>
    %291 = arith.addf %279, %290 : vector<1x256xf32>
    %c0_46 = arith.constant 0 : index
    %c2_47 = arith.constant 2 : index
    %c0_48 = arith.constant 0 : index
    %292 = vector.load %arg3[%c0_46, %c2_47, %c0_48] : memref<1x3x256xf32, #tpu.memory_space<vmem>>, vector<1x1x256xf32>
    %293 = vector.shape_cast %292 : vector<1x1x256xf32> to vector<1x256xf32>
    %c17_i32_49 = arith.constant 17 : i32
    %294 = tpu.dynamic_rotate %293 by %c17_i32_49 dim 1 : vector<1x256xf32>, i32 -> vector<1x256xf32>
    %c0_50 = arith.constant 0 : index
    %c0_51 = arith.constant 0 : index
    %295 = vector.load %arg2[%c0_50, %c0_51] : memref<9x256xf32, #tpu.memory_space<vmem>>, vector<1x256xf32>
    %296 = arith.mulf %294, %295 : vector<1x256xf32>
    %297 = vector.broadcast %18 : f32 to vector<1x256xf32>
    %298 = arith.mulf %297, %296 : vector<1x256xf32>
    %299 = arith.addf %285, %298 : vector<1x256xf32>
    %300 = vector.broadcast %45 : f32 to vector<1x256xf32>
    %301 = arith.mulf %300, %296 : vector<1x256xf32>
    %302 = arith.addf %288, %301 : vector<1x256xf32>
    %303 = vector.broadcast %72 : f32 to vector<1x256xf32>
    %304 = arith.mulf %303, %296 : vector<1x256xf32>
    %305 = arith.addf %291, %304 : vector<1x256xf32>
    %c16_i32_52 = arith.constant 16 : i32
    %306 = tpu.dynamic_rotate %293 by %c16_i32_52 dim 1 : vector<1x256xf32>, i32 -> vector<1x256xf32>
    %c1_53 = arith.constant 1 : index
    %c0_54 = arith.constant 0 : index
    %307 = vector.load %arg2[%c1_53, %c0_54] : memref<9x256xf32, #tpu.memory_space<vmem>>, vector<1x256xf32>
    %308 = arith.mulf %306, %307 : vector<1x256xf32>
    %309 = vector.broadcast %19 : f32 to vector<1x256xf32>
    %310 = arith.mulf %309, %308 : vector<1x256xf32>
    %311 = arith.addf %299, %310 : vector<1x256xf32>
    %312 = vector.broadcast %46 : f32 to vector<1x256xf32>
    %313 = arith.mulf %312, %308 : vector<1x256xf32>
    %314 = arith.addf %302, %313 : vector<1x256xf32>
    %315 = vector.broadcast %73 : f32 to vector<1x256xf32>
    %316 = arith.mulf %315, %308 : vector<1x256xf32>
    %317 = arith.addf %305, %316 : vector<1x256xf32>
    %c15_i32_55 = arith.constant 15 : i32
    %318 = tpu.dynamic_rotate %293 by %c15_i32_55 dim 1 : vector<1x256xf32>, i32 -> vector<1x256xf32>
    %c2_56 = arith.constant 2 : index
    %c0_57 = arith.constant 0 : index
    %319 = vector.load %arg2[%c2_56, %c0_57] : memref<9x256xf32, #tpu.memory_space<vmem>>, vector<1x256xf32>
    %320 = arith.mulf %318, %319 : vector<1x256xf32>
    %321 = vector.broadcast %20 : f32 to vector<1x256xf32>
    %322 = arith.mulf %321, %320 : vector<1x256xf32>
    %323 = arith.addf %311, %322 : vector<1x256xf32>
    %324 = vector.broadcast %47 : f32 to vector<1x256xf32>
    %325 = arith.mulf %324, %320 : vector<1x256xf32>
    %326 = arith.addf %314, %325 : vector<1x256xf32>
    %327 = vector.broadcast %74 : f32 to vector<1x256xf32>
    %328 = arith.mulf %327, %320 : vector<1x256xf32>
    %329 = arith.addf %317, %328 : vector<1x256xf32>
    %c1_i32_58 = arith.constant 1 : i32
    %330 = tpu.dynamic_rotate %293 by %c1_i32_58 dim 1 : vector<1x256xf32>, i32 -> vector<1x256xf32>
    %c3_59 = arith.constant 3 : index
    %c0_60 = arith.constant 0 : index
    %331 = vector.load %arg2[%c3_59, %c0_60] : memref<9x256xf32, #tpu.memory_space<vmem>>, vector<1x256xf32>
    %332 = arith.mulf %330, %331 : vector<1x256xf32>
    %333 = vector.broadcast %21 : f32 to vector<1x256xf32>
    %334 = arith.mulf %333, %332 : vector<1x256xf32>
    %335 = arith.addf %323, %334 : vector<1x256xf32>
    %336 = vector.broadcast %48 : f32 to vector<1x256xf32>
    %337 = arith.mulf %336, %332 : vector<1x256xf32>
    %338 = arith.addf %326, %337 : vector<1x256xf32>
    %339 = vector.broadcast %75 : f32 to vector<1x256xf32>
    %340 = arith.mulf %339, %332 : vector<1x256xf32>
    %341 = arith.addf %329, %340 : vector<1x256xf32>
    %342 = vector.broadcast %22 : f32 to vector<1x256xf32>
    %343 = arith.mulf %342, %293 : vector<1x256xf32>
    %344 = arith.addf %335, %343 : vector<1x256xf32>
    %345 = vector.broadcast %49 : f32 to vector<1x256xf32>
    %346 = arith.mulf %345, %293 : vector<1x256xf32>
    %347 = arith.addf %338, %346 : vector<1x256xf32>
    %348 = vector.broadcast %76 : f32 to vector<1x256xf32>
    %349 = arith.mulf %348, %293 : vector<1x256xf32>
    %350 = arith.addf %341, %349 : vector<1x256xf32>
    %c255_i32_61 = arith.constant 255 : i32
    %351 = tpu.dynamic_rotate %293 by %c255_i32_61 dim 1 : vector<1x256xf32>, i32 -> vector<1x256xf32>
    %c5_62 = arith.constant 5 : index
    %c0_63 = arith.constant 0 : index
    %352 = vector.load %arg2[%c5_62, %c0_63] : memref<9x256xf32, #tpu.memory_space<vmem>>, vector<1x256xf32>
    %353 = arith.mulf %351, %352 : vector<1x256xf32>
    %354 = vector.broadcast %23 : f32 to vector<1x256xf32>
    %355 = arith.mulf %354, %353 : vector<1x256xf32>
    %356 = arith.addf %344, %355 : vector<1x256xf32>
    %357 = vector.broadcast %50 : f32 to vector<1x256xf32>
    %358 = arith.mulf %357, %353 : vector<1x256xf32>
    %359 = arith.addf %347, %358 : vector<1x256xf32>
    %360 = vector.broadcast %77 : f32 to vector<1x256xf32>
    %361 = arith.mulf %360, %353 : vector<1x256xf32>
    %362 = arith.addf %350, %361 : vector<1x256xf32>
    %c241_i32_64 = arith.constant 241 : i32
    %363 = tpu.dynamic_rotate %293 by %c241_i32_64 dim 1 : vector<1x256xf32>, i32 -> vector<1x256xf32>
    %c6_65 = arith.constant 6 : index
    %c0_66 = arith.constant 0 : index
    %364 = vector.load %arg2[%c6_65, %c0_66] : memref<9x256xf32, #tpu.memory_space<vmem>>, vector<1x256xf32>
    %365 = arith.mulf %363, %364 : vector<1x256xf32>
    %366 = vector.broadcast %24 : f32 to vector<1x256xf32>
    %367 = arith.mulf %366, %365 : vector<1x256xf32>
    %368 = arith.addf %356, %367 : vector<1x256xf32>
    %369 = vector.broadcast %51 : f32 to vector<1x256xf32>
    %370 = arith.mulf %369, %365 : vector<1x256xf32>
    %371 = arith.addf %359, %370 : vector<1x256xf32>
    %372 = vector.broadcast %78 : f32 to vector<1x256xf32>
    %373 = arith.mulf %372, %365 : vector<1x256xf32>
    %374 = arith.addf %362, %373 : vector<1x256xf32>
    %c240_i32_67 = arith.constant 240 : i32
    %375 = tpu.dynamic_rotate %293 by %c240_i32_67 dim 1 : vector<1x256xf32>, i32 -> vector<1x256xf32>
    %c7_68 = arith.constant 7 : index
    %c0_69 = arith.constant 0 : index
    %376 = vector.load %arg2[%c7_68, %c0_69] : memref<9x256xf32, #tpu.memory_space<vmem>>, vector<1x256xf32>
    %377 = arith.mulf %375, %376 : vector<1x256xf32>
    %378 = vector.broadcast %25 : f32 to vector<1x256xf32>
    %379 = arith.mulf %378, %377 : vector<1x256xf32>
    %380 = arith.addf %368, %379 : vector<1x256xf32>
    %381 = vector.broadcast %52 : f32 to vector<1x256xf32>
    %382 = arith.mulf %381, %377 : vector<1x256xf32>
    %383 = arith.addf %371, %382 : vector<1x256xf32>
    %384 = vector.broadcast %79 : f32 to vector<1x256xf32>
    %385 = arith.mulf %384, %377 : vector<1x256xf32>
    %386 = arith.addf %374, %385 : vector<1x256xf32>
    %c239_i32_70 = arith.constant 239 : i32
    %387 = tpu.dynamic_rotate %293 by %c239_i32_70 dim 1 : vector<1x256xf32>, i32 -> vector<1x256xf32>
    %c8_71 = arith.constant 8 : index
    %c0_72 = arith.constant 0 : index
    %388 = vector.load %arg2[%c8_71, %c0_72] : memref<9x256xf32, #tpu.memory_space<vmem>>, vector<1x256xf32>
    %389 = arith.mulf %387, %388 : vector<1x256xf32>
    %390 = vector.broadcast %26 : f32 to vector<1x256xf32>
    %391 = arith.mulf %390, %389 : vector<1x256xf32>
    %392 = arith.addf %380, %391 : vector<1x256xf32>
    %393 = vector.broadcast %53 : f32 to vector<1x256xf32>
    %394 = arith.mulf %393, %389 : vector<1x256xf32>
    %395 = arith.addf %383, %394 : vector<1x256xf32>
    %396 = vector.broadcast %80 : f32 to vector<1x256xf32>
    %397 = arith.mulf %396, %389 : vector<1x256xf32>
    %398 = arith.addf %386, %397 : vector<1x256xf32>
    %c0_73 = arith.constant 0 : index
    %c0_74 = arith.constant 0 : index
    %c0_75 = arith.constant 0 : index
    %399 = vector.load %arg4[%c0_73, %c0_74, %c0_75] : memref<1x3x256xf32, #tpu.memory_space<vmem>>, vector<1x1x256xf32>
    %400 = vector.shape_cast %399 : vector<1x1x256xf32> to vector<1x256xf32>
    %401 = vector.shape_cast %392 : vector<1x256xf32> to vector<1x1x256xf32>
    tpu.vector_store %arg4[%c0_73, %c0_74, %c0_75], %401 {strides = array<i32>} : memref<1x3x256xf32, #tpu.memory_space<vmem>>, vector<1x1x256xf32>,
    %c0_76 = arith.constant 0 : index
    %c1_77 = arith.constant 1 : index
    %c0_78 = arith.constant 0 : index
    %402 = vector.load %arg4[%c0_76, %c1_77, %c0_78] : memref<1x3x256xf32, #tpu.memory_space<vmem>>, vector<1x1x256xf32>
    %403 = vector.shape_cast %402 : vector<1x1x256xf32> to vector<1x256xf32>
    %404 = vector.shape_cast %395 : vector<1x256xf32> to vector<1x1x256xf32>
    tpu.vector_store %arg4[%c0_76, %c1_77, %c0_78], %404 {strides = array<i32>} : memref<1x3x256xf32, #tpu.memory_space<vmem>>, vector<1x1x256xf32>,
    %c0_79 = arith.constant 0 : index
    %c2_80 = arith.constant 2 : index
    %c0_81 = arith.constant 0 : index
    %405 = vector.load %arg4[%c0_79, %c2_80, %c0_81] : memref<1x3x256xf32, #tpu.memory_space<vmem>>, vector<1x1x256xf32>
    %406 = vector.shape_cast %405 : vector<1x1x256xf32> to vector<1x256xf32>
    %407 = vector.shape_cast %398 : vector<1x256xf32> to vector<1x1x256xf32>
    tpu.vector_store %arg4[%c0_79, %c2_80, %c0_81], %407 {strides = array<i32>} : memref<1x3x256xf32, #tpu.memory_space<vmem>>, vector<1x1x256xf32>,
    return
  }
  func.func @transform_0(%arg0: i32) -> i32 {
    %c0_i32 = arith.constant 0 : i32
    %c0_i32_0 = arith.constant 0 : i32
    return %c0_i32 : i32
  }
  func.func @transform_1(%arg0: i32) -> (i32, i32) {
    %c0_i32 = arith.constant 0 : i32
    %c0_i32_0 = arith.constant 0 : i32
    %c0_i32_1 = arith.constant 0 : i32
    return %c0_i32, %c0_i32_0 : i32, i32
  }
  func.func @transform_2(%arg0: i32) -> (i32, i32, i32) {
    %c0_i32 = arith.constant 0 : i32
    %c0_i32_0 = arith.constant 0 : i32
    %c0_i32_1 = arith.constant 0 : i32
    return %arg0, %c0_i32, %c0_i32_0 : i32, i32, i32
  }
  func.func @transform_3(%arg0: i32) -> (i32, i32, i32) {
    %c0_i32 = arith.constant 0 : i32
    %c0_i32_0 = arith.constant 0 : i32
    %c0_i32_1 = arith.constant 0 : i32
    return %arg0, %c0_i32, %c0_i32_0 : i32, i32, i32
  }
}

</mosaic_0001>

<llo_original>
// kernel: tpu_custom_call.1
$region0: #{tpu_custom_call.1}
  #allocation0 [shape = 'u32[]', space=smem, size = 0x4, offset = 0x4, fixed_abs, tag = 'smem constant byte address 0x4 - core index']
  #allocation1 [shape = 'u32[144,128]{1,0:T(1,128)}', space=vmem, size = 0x12000, scoped, tag = 'internal scratch']
  %s0 = inlined_call_operand.vmem [shape: f32[81], index: 0, kind: input, shape index: {}]
  %s1 = inlined_call_operand.hbm [shape: f32[9,256], index: 1, kind: input, shape index: {}]
  %s2 = inlined_call_operand.vmem [shape: f32[2,3,256], index: 2, kind: input, shape index: {}]
  %s3 = inlined_call_operand.vmem [shape: f32[2,3,256], index: 3, kind: output, shape index: {}]
  %s4 = sld [smem:[#allocation0]]
  $region53: #{tpu_custom_call.1} parent=0
    _
  %s6 = ssub.s32 1, %s4
  %s7 = scalar_select 0, %s6, %s4
  $region1: #{tpu_custom_call.1} parent=0
    #allocation2 [shape = 'u8[512]{0}', space=smem, size = 0x200, scoped, tag = 'input window, operand 0, single buffered']
    #allocation3 [shape = 's32[2]{0}', space=sflag, size = 0x8, scoped, tag = 'scoped memory for tpu_custom_call.1']
    #allocation4 [shape = 's32[2]{0}', space=sflag, size = 0x8, scoped, tag = 'scoped memory for tpu_custom_call.1']
    #allocation5 [shape = 'u8[16384]{0}', space=vmem, size = 0x4000, scoped, tag = 'input window, operand 1, single buffered']
    %8 = vsyncpa [#allocation4], 0
    %9 = vsyncpa [#allocation3], 0
    loop: start=0, step=1, limit=4
    $region2: #{tpu_custom_call.1} parent=1 // loop_pre_header
      _
    $region3: #{tpu_custom_call.1} parent=1 // loop_header
      %s11 = sphi 0, %s15
      %p12 = scmp.ge.s32.totalorder %s11, 4
      %s19 = sphi 0, %s19
      %s21 = sphi 0, %s19
      %s22 = sphi 0, %s21
      %s36 = sphi 0, %s22
      %s40 = sphi 0, %s40
      %s42 = sphi 0, %s40
      %s43 = sphi 0, %s42
      %s57 = sphi 0, %s43
      %s63 = sphi 0, %s65
      %s66 = sphi 0, %s63
      %s67 = sphi 0, %s66
      %s83 = sphi 0, %s67
      %s89 = sphi 0, %s91
      %s92 = sphi 0, %s89
      %s93 = sphi 0, %s92
      %s109 = sphi 0, %s93
    $region4: #{tpu_custom_call.1} parent=1 // loop_header_branch
      %14 = sbr.rel (%p12) target = $region8
    $region5: #{tpu_custom_call.1} parent=1 // loop_body
      %s16 = ssub.s32 %s11, 1
      %s17 = ssub.s32 %s11, 2
      %s18 = sadd.s32 %s11, 1
      %s20 = sadd.s32 %s19, 1
      %p23 = scmp.eq.s32.totalorder %s11, 1
      %p24 = scmp.ne.s32.totalorder %s19, %s21
      %p25 = scmp.eq.s32.totalorder %s11, 0
      %p26 = por %p24, %p25
      %p27 = scmp.ne.s32.totalorder %s19, %s21
      %p28 = scmp.eq.s32.totalorder %s16, 1
      %p29 = por %p27, %p28
      %p30 = scmp.ne.s32.totalorder %s21, %s22
      %p31 = scmp.eq.s32.totalorder %s16, 0
      %p32 = por %p30, %p31
      %p33 = scmp.ne.s32.totalorder %s21, %s22
      %p34 = scmp.eq.s32.totalorder %s17, 1
      %p35 = por %p33, %p34
      %p37 = scmp.ne.s32.totalorder %s22, %s36
      %p38 = scmp.eq.s32.totalorder %s17, 0
      %p39 = por %p37, %p38
      %s41 = sadd.s32 %s40, 1
      %p44 = scmp.eq.s32.totalorder %s11, 1
      %p45 = scmp.ne.s32.totalorder %s40, %s42
      %p46 = scmp.eq.s32.totalorder %s11, 0
      %p47 = por %p45, %p46
      %p48 = scmp.ne.s32.totalorder %s40, %s42
      %p49 = scmp.eq.s32.totalorder %s16, 1
      %p50 = por %p48, %p49
      %p51 = scmp.ne.s32.totalorder %s42, %s43
      %p52 = scmp.eq.s32.totalorder %s16, 0
      %p53 = por %p51, %p52
      %p54 = scmp.ne.s32.totalorder %s42, %s43
      %p55 = scmp.eq.s32.totalorder %s17, 1
      %p56 = por %p54, %p55
      %p58 = scmp.ne.s32.totalorder %s43, %s57
      %p59 = scmp.eq.s32.totalorder %s17, 0
      %p60 = por %p58, %p59
      %s61 = ssub.s32 %s11, %s18
      %p62 = scmp.eq.s32.totalorder %s61, 0
      %s64 = sadd.s32 %s63, 1
      %s65 = scalar_select %p62, %s63, %s64
      %p68 = pneg %p62
      %p69 = scmp.eq.s32.totalorder %s11, 1
      %p70 = por %p68, %p69
      %p71 = scmp.ne.s32.totalorder %s63, %s66
      %p72 = scmp.eq.s32.totalorder %s11, 0
      %p73 = por %p71, %p72
      %p74 = scmp.ne.s32.totalorder %s63, %s66
      %p75 = scmp.eq.s32.totalorder %s16, 1
      %p76 = por %p74, %p75
      %p77 = scmp.ne.s32.totalorder %s66, %s67
      %p78 = scmp.eq.s32.totalorder %s16, 0
      %p79 = por %p77, %p78
      %p80 = scmp.ne.s32.totalorder %s66, %s67
      %p81 = scmp.eq.s32.totalorder %s17, 1
      %p82 = por %p80, %p81
      %p84 = scmp.ne.s32.totalorder %s67, %s83
      %p85 = scmp.eq.s32.totalorder %s17, 0
      %p86 = por %p84, %p85
      %s87 = ssub.s32 %s11, %s18
      %p88 = scmp.eq.s32.totalorder %s87, 0
      %s90 = sadd.s32 %s89, 1
      %s91 = scalar_select %p88, %s89, %s90
      %p94 = pneg %p88
      %p95 = scmp.eq.s32.totalorder %s11, 1
      %p96 = por %p94, %p95
      %p97 = scmp.ne.s32.totalorder %s89, %s92
      %p98 = scmp.eq.s32.totalorder %s11, 0
      %p99 = por %p97, %p98
      %p100 = scmp.ne.s32.totalorder %s89, %s92
      %p101 = scmp.eq.s32.totalorder %s16, 1
      %p102 = por %p100, %p101
      %p103 = scmp.ne.s32.totalorder %s92, %s93
      %p104 = scmp.eq.s32.totalorder %s16, 0
      %p105 = por %p103, %p104
      %p106 = scmp.ne.s32.totalorder %s92, %s93
      %p107 = scmp.eq.s32.totalorder %s17, 1
      %p108 = por %p106, %p107
      %p110 = scmp.ne.s32.totalorder %s93, %s109
      %p111 = scmp.eq.s32.totalorder %s17, 0
      %p112 = por %p110, %p111
      %p113 = scmp.le.s32.totalorder 1, %s11
      %p114 = scmp.lt.s32.totalorder %s11, 3
      %p115 = pnand %p113, %p114
      %p116 = pneg %p115
      // Predicated region
      $region9: #{tpu_custom_call.1} parent=5 // pred_check
        _
      $region10: #{tpu_custom_call.1} parent=5 // pred_check_branch
        %118 = sbr.rel (%p115) target = $region12
      $region11: #{tpu_custom_call.1} parent=5 // pred_region
        %s119 = ssub.s32 %s11, 1
        // Predicated region
        $region13: #{tpu_custom_call.1} parent=11 // pred_check
          %p120 = pneg %p32
        $region14: #{tpu_custom_call.1} parent=11 // pred_check_branch
          %122 = sbr.rel (%p120) target = $region16
        $region15: #{tpu_custom_call.1} parent=11 // pred_region
          %s124 = ssub.s32 16, 16
          %125 = vsyncadd [#allocation4], %s124
          %s127 = sshll.u32 %s0, 4
          %s128 = int_to_ptr.vmem [resolvable:$true] %s127
          %130 = dma.vmem_to_smem %s128, 16, [#allocation2], [#allocation4]
        $region16: #{tpu_custom_call.1} parent=11 // pred_fallthru
          _
        // Predicated region
        $region17: #{tpu_custom_call.1} parent=11 // pred_check
          %p131 = pneg %p53
        $region18: #{tpu_custom_call.1} parent=11 // pred_check_branch
          %133 = sbr.rel (%p131) target = $region20
        $region19: #{tpu_custom_call.1} parent=11 // pred_region
          %s135 = ssub.s32 512, 512
          %136 = vsyncadd [#allocation3], %s135
          %s137 = sshll.u32 [#allocation5], 4
          %s138 = int_to_ptr.vmem [resolvable:$true] %s137
          %143 = dma.hbm_to_vmem [thread:$0]  %s1, 512, %s138, [#allocation3], 256, 256, 16
        $region20: #{tpu_custom_call.1} parent=11 // pred_fallthru
          _
      $region12: #{tpu_custom_call.1} parent=5 // pred_fallthru
        _
      %p144 = scmp.lt.s32.totalorder %s11, 2
      // Predicated region
      $region21: #{tpu_custom_call.1} parent=5 // pred_check
        %p145 = pneg %p144
      $region22: #{tpu_custom_call.1} parent=5 // pred_check_branch
        %147 = sbr.rel (%p145) target = $region24
      $region23: #{tpu_custom_call.1} parent=5 // pred_region
        // Predicated region
        $region25: #{tpu_custom_call.1} parent=23 // pred_check
          %p148 = pneg %p73
        $region26: #{tpu_custom_call.1} parent=23 // pred_check_branch
          %150 = sbr.rel (%p148) target = $region28
        $region27: #{tpu_custom_call.1} parent=23 // pred_region
          %p151 = scmp.lt.s32.totalorder %s11, 1
          %s152 = scalar_select %p151, %s11, 1
          %s153 = smul.addr %s152, 2
          %s154 = smul.addr %s153, 4
          %s155 = scalar_lea.vmem %s2, %s154
        $region28: #{tpu_custom_call.1} parent=23 // pred_fallthru
          _
      $region24: #{tpu_custom_call.1} parent=5 // pred_fallthru
        _
      %p156 = scmp.le.s32.totalorder 1, %s11
      %p157 = scmp.lt.s32.totalorder %s11, 3
      %p158 = pnand %p156, %p157
      %p159 = pneg %p158
      // Predicated region
      $region29: #{tpu_custom_call.1} parent=5 // pred_check
        _
      $region30: #{tpu_custom_call.1} parent=5 // pred_check_branch
        %161 = sbr.rel (%p158) target = $region32
      $region31: #{tpu_custom_call.1} parent=5 // pred_region
        %s162 = ssub.s32 %s11, 1
        // Predicated region
        $region33: #{tpu_custom_call.1} parent=31 // pred_check
          %p163 = pneg %p32
        $region34: #{tpu_custom_call.1} parent=31 // pred_check_branch
          %165 = sbr.rel (%p163) target = $region36
        $region35: #{tpu_custom_call.1} parent=31 // pred_region
          %166 = dma.done [#allocation4], 16
        $region36: #{tpu_custom_call.1} parent=31 // pred_fallthru
          _
        // Predicated region
        $region37: #{tpu_custom_call.1} parent=31 // pred_check
          %p167 = pneg %p53
        $region38: #{tpu_custom_call.1} parent=31 // pred_check_branch
          %169 = sbr.rel (%p167) target = $region40
        $region39: #{tpu_custom_call.1} parent=31 // pred_region
          %170 = dma.done [#allocation3], 512
        $region40: #{tpu_custom_call.1} parent=31 // pred_fallthru
          _
        %171 = sfence
        %p172 = pneg %p32
        %p173 = pneg %p29
        %p174 = pneg %p53
        %p175 = pneg %p50
        %p176 = scmp.lt.s32.totalorder %s16, 1
        %s177 = scalar_select %p176, %s16, 1
        %s178 = smul.addr %s177, 2
        %s179 = smul.addr %s178, 4
        %s180 = scalar_lea.vmem %s2, %s179
        %p181 = pneg %p79
        %p182 = pneg %p76
        %p183 = pneg %p105
        %p184 = pneg %p102
        %p185 = scmp.lt.s32.totalorder %s16, 1
        %s186 = scalar_select %p185, %s16, 1
        %s187 = smul.addr %s186, 2
        %s188 = smul.addr %s187, 4
        %s189 = scalar_lea.vmem %s3, %s188
        %p190 = scmp.lt.s32.totalorder %s16, 1
        %s191 = scalar_select %p190, %s16, 1
        %s192 = smul.addr %s191, 2
        %s193 = smul.addr %s192, 4
        %s194 = scalar_lea.vmem %s2, %s193
        %p195 = scmp.lt.s32.totalorder %s16, 1
        %s196 = scalar_select %p195, %s16, 1
        %s197 = smul.addr %s196, 2
        %s198 = smul.addr %s197, 4
        %s199 = scalar_lea.vmem %s3, %s198
        %s200 = sld [smem:[#allocation2]]
        %s201 = sld [smem:[#allocation2 + $0x1]]
        %s202 = sld [smem:[#allocation2 + $0x2]]
        %s203 = sld [smem:[#allocation2 + $0x3]]
        %s204 = sld [smem:[#allocation2 + $0x4]]
        %s205 = sld [smem:[#allocation2 + $0x5]]
        %s206 = sld [smem:[#allocation2 + $0x6]]
        %s207 = sld [smem:[#allocation2 + $0x7]]
        %s208 = sld [smem:[#allocation2 + $0x8]]
        %s209 = sld [smem:[#allocation2 + $0x9]]
        %s210 = sld [smem:[#allocation2 + $0xa]]
        %s211 = sld [smem:[#allocation2 + $0xb]]
        %s212 = sld [smem:[#allocation2 + $0xc]]
        %s213 = sld [smem:[#allocation2 + $0xd]]
        %s214 = sld [smem:[#allocation2 + $0xe]]
        %s215 = sld [smem:[#allocation2 + $0xf]]
        %s216 = sld [smem:[#allocation2 + $0x10]]
        %s217 = sld [smem:[#allocation2 + $0x11]]
        %s218 = sld [smem:[#allocation2 + $0x12]]
        %s219 = sld [smem:[#allocation2 + $0x13]]
        %s220 = sld [smem:[#allocation2 + $0x14]]
        %s221 = sld [smem:[#allocation2 + $0x15]]
        %s222 = sld [smem:[#allocation2 + $0x16]]
        %s223 = sld [smem:[#allocation2 + $0x17]]
        %s224 = sld [smem:[#allocation2 + $0x18]]
        %s225 = sld [smem:[#allocation2 + $0x19]]
        %s226 = sld [smem:[#allocation2 + $0x1a]]
        %s227 = sld [smem:[#allocation2 + $0x1b]]
        %s228 = sld [smem:[#allocation2 + $0x1c]]
        %s229 = sld [smem:[#allocation2 + $0x1d]]
        %s230 = sld [smem:[#allocation2 + $0x1e]]
        %s231 = sld [smem:[#allocation2 + $0x1f]]
        %s232 = sld [smem:[#allocation2 + $0x20]]
        %s233 = sld [smem:[#allocation2 + $0x21]]
        %s234 = sld [smem:[#allocation2 + $0x22]]
        %s235 = sld [smem:[#allocation2 + $0x23]]
        %s236 = sld [smem:[#allocation2 + $0x24]]
        %s237 = sld [smem:[#allocation2 + $0x25]]
        %s238 = sld [smem:[#allocation2 + $0x26]]
        %s239 = sld [smem:[#allocation2 + $0x27]]
        %s240 = sld [smem:[#allocation2 + $0x28]]
        %s241 = sld [smem:[#allocation2 + $0x29]]
        %s242 = sld [smem:[#allocation2 + $0x2a]]
        %s243 = sld [smem:[#allocation2 + $0x2b]]
        %s244 = sld [smem:[#allocation2 + $0x2c]]
        %s245 = sld [smem:[#allocation2 + $0x2d]]
        %s246 = sld [smem:[#allocation2 + $0x2e]]
        %s247 = sld [smem:[#allocation2 + $0x2f]]
        %s248 = sld [smem:[#allocation2 + $0x30]]
        %s249 = sld [smem:[#allocation2 + $0x31]]
        %s250 = sld [smem:[#allocation2 + $0x32]]
        %s251 = sld [smem:[#allocation2 + $0x33]]
        %s252 = sld [smem:[#allocation2 + $0x34]]
        %s253 = sld [smem:[#allocation2 + $0x35]]
        %s254 = sld [smem:[#allocation2 + $0x36]]
        %s255 = sld [smem:[#allocation2 + $0x37]]
        %s256 = sld [smem:[#allocation2 + $0x38]]
        %s257 = sld [smem:[#allocation2 + $0x39]]
        %s258 = sld [smem:[#allocation2 + $0x3a]]
        %s259 = sld [smem:[#allocation2 + $0x3b]]
        %s260 = sld [smem:[#allocation2 + $0x3c]]
        %s261 = sld [smem:[#allocation2 + $0x3d]]
        %s262 = sld [smem:[#allocation2 + $0x3e]]
        %s263 = sld [smem:[#allocation2 + $0x3f]]
        %s264 = sld [smem:[#allocation2 + $0x40]]
        %s265 = sld [smem:[#allocation2 + $0x41]]
        %s266 = sld [smem:[#allocation2 + $0x42]]
        %s267 = sld [smem:[#allocation2 + $0x43]]
        %s268 = sld [smem:[#allocation2 + $0x44]]
        %s269 = sld [smem:[#allocation2 + $0x45]]
        %s270 = sld [smem:[#allocation2 + $0x46]]
        %s271 = sld [smem:[#allocation2 + $0x47]]
        %s272 = sld [smem:[#allocation2 + $0x48]]
        %s273 = sld [smem:[#allocation2 + $0x49]]
        %s274 = sld [smem:[#allocation2 + $0x4a]]
        %s275 = sld [smem:[#allocation2 + $0x4b]]
        %s276 = sld [smem:[#allocation2 + $0x4c]]
        %s277 = sld [smem:[#allocation2 + $0x4d]]
        %s278 = sld [smem:[#allocation2 + $0x4e]]
        %s279 = sld [smem:[#allocation2 + $0x4f]]
        %s280 = sld [smem:[#allocation2 + $0x50]]
        %v281 = vld [vmem:[%s194] ss:$4 sm:$0x3]
        %v283 = vlaneseq
        %v284 = vshrl.u32 %v283, 7
        %v285 = vsub.s32 0, %v284
        %v286 = vrot.slane %v281, %v285
        %v287 = vlaneseq
        %v288 = vshrl.u32 %v287, 7
        %v289 = vsub.s32 1, %v288
        %v290 = vrot.slane %v281, %v289
        %293 = vrot.lane.b32.xlu0 %v286, 17
        %v294 = vpop.permute.xlu0 %293
        %295 = vrot.lane.b32.xlu0 %v290, 17
        %v296 = vpop.permute.xlu0 %295
        %v297 = vlaneseq
        %v298 = vand.u32 %v297, 127
        %vm299 = vcmp.lt.s32.totalorder %v298, 17
        %v300 = vsel %vm299, %v294, %v296
        %v301 = vsel %vm299, %v296, %v294
        %v302 = vld [vmem:[#allocation5] ss:$8 sm:$0x3]
        %v304 = vlaneseq
        %v305 = vshrl.u32 %v304, 7
        %v306 = vsub.s32 0, %v305
        %v307 = vrot.slane %v302, %v306
        %v308 = vlaneseq
        %v309 = vshrl.u32 %v308, 7
        %v310 = vsub.s32 1, %v309
        %v311 = vrot.slane %v302, %v310
        %v314 = vmul.f32 %v301, %v307
        %v315 = vmul.f32 %v300, %v311
        %v316 = vstv %s200
        %v317 = vmul.f32 %v316, %v314
        %v318 = vmul.f32 %v316, %v315
        %v319 = vstv %s227
        %v320 = vmul.f32 %v319, %v314
        %v321 = vmul.f32 %v319, %v315
        %v322 = vstv %s254
        %v323 = vmul.f32 %v322, %v314
        %v324 = vmul.f32 %v322, %v315
        %325 = vrot.lane.b32.xlu0 %v286, 16
        %v326 = vpop.permute.xlu0 %325
        %327 = vrot.lane.b32.xlu0 %v290, 16
        %v328 = vpop.permute.xlu0 %327
        %vm329 = vcmp.lt.s32.totalorder %v298, 16
        %v330 = vsel %vm329, %v326, %v328
        %v331 = vsel %vm329, %v328, %v326
        %s332 = scalar_lea.vmem [#allocation5], 1
        %v333 = vld [vmem:[%s332] ss:$8 sm:$0x3]
        %v335 = vlaneseq
        %v336 = vshrl.u32 %v335, 7
        %v337 = vsub.s32 0, %v336
        %v338 = vrot.slane %v333, %v337
        %v339 = vlaneseq
        %v340 = vshrl.u32 %v339, 7
        %v341 = vsub.s32 1, %v340
        %v342 = vrot.slane %v333, %v341
        %v345 = vmul.f32 %v331, %v338
        %v346 = vmul.f32 %v330, %v342
        %v347 = vstv %s201
        %v348 = vmul.f32 %v347, %v345
        %v349 = vmul.f32 %v347, %v346
        %v350 = vadd.f32 %v317, %v348
        %v351 = vadd.f32 %v318, %v349
        %v352 = vstv %s228
        %v353 = vmul.f32 %v352, %v345
        %v354 = vmul.f32 %v352, %v346
        %v355 = vadd.f32 %v320, %v353
        %v356 = vadd.f32 %v321, %v354
        %v357 = vstv %s255
        %v358 = vmul.f32 %v357, %v345
        %v359 = vmul.f32 %v357, %v346
        %v360 = vadd.f32 %v323, %v358
        %v361 = vadd.f32 %v324, %v359
        %362 = vrot.lane.b32.xlu0 %v286, 15
        %v363 = vpop.permute.xlu0 %362
        %364 = vrot.lane.b32.xlu0 %v290, 15
        %v365 = vpop.permute.xlu0 %364
        %vm366 = vcmp.lt.s32.totalorder %v298, 15
        %v367 = vsel %vm366, %v363, %v365
        %v368 = vsel %vm366, %v365, %v363
        %s369 = scalar_lea.vmem [#allocation5], 2
        %v370 = vld [vmem:[%s369] ss:$8 sm:$0x3]
        %v372 = vlaneseq
        %v373 = vshrl.u32 %v372, 7
        %v374 = vsub.s32 0, %v373
        %v375 = vrot.slane %v370, %v374
        %v376 = vlaneseq
        %v377 = vshrl.u32 %v376, 7
        %v378 = vsub.s32 1, %v377
        %v379 = vrot.slane %v370, %v378
        %v382 = vmul.f32 %v368, %v375
        %v383 = vmul.f32 %v367, %v379
        %v384 = vstv %s202
        %v385 = vmul.f32 %v384, %v382
        %v386 = vmul.f32 %v384, %v383
        %v387 = vadd.f32 %v350, %v385
        %v388 = vadd.f32 %v351, %v386
        %v389 = vstv %s229
        %v390 = vmul.f32 %v389, %v382
        %v391 = vmul.f32 %v389, %v383
        %v392 = vadd.f32 %v355, %v390
        %v393 = vadd.f32 %v356, %v391
        %v394 = vstv %s256
        %v395 = vmul.f32 %v394, %v382
        %v396 = vmul.f32 %v394, %v383
        %v397 = vadd.f32 %v360, %v395
        %v398 = vadd.f32 %v361, %v396
        %399 = vrot.lane.b32.xlu0 %v286, 1
        %v400 = vpop.permute.xlu0 %399
        %401 = vrot.lane.b32.xlu0 %v290, 1
        %v402 = vpop.permute.xlu0 %401
        %vm403 = vcmp.lt.s32.totalorder %v298, 1
        %v404 = vsel %vm403, %v400, %v402
        %v405 = vsel %vm403, %v402, %v400
        %s406 = scalar_lea.vmem [#allocation5], 3
        %v407 = vld [vmem:[%s406] ss:$8 sm:$0x3]
        %v409 = vlaneseq
        %v410 = vshrl.u32 %v409, 7
        %v411 = vsub.s32 0, %v410
        %v412 = vrot.slane %v407, %v411
        %v413 = vlaneseq
        %v414 = vshrl.u32 %v413, 7
        %v415 = vsub.s32 1, %v414
        %v416 = vrot.slane %v407, %v415
        %v419 = vmul.f32 %v405, %v412
        %v420 = vmul.f32 %v404, %v416
        %v421 = vstv %s203
        %v422 = vmul.f32 %v421, %v419
        %v423 = vmul.f32 %v421, %v420
        %v424 = vadd.f32 %v387, %v422
        %v425 = vadd.f32 %v388, %v423
        %v426 = vstv %s230
        %v427 = vmul.f32 %v426, %v419
        %v428 = vmul.f32 %v426, %v420
        %v429 = vadd.f32 %v392, %v427
        %v430 = vadd.f32 %v393, %v428
        %v431 = vstv %s257
        %v432 = vmul.f32 %v431, %v419
        %v433 = vmul.f32 %v431, %v420
        %v434 = vadd.f32 %v397, %v432
        %v435 = vadd.f32 %v398, %v433
        %v436 = vstv %s204
        %v437 = vmul.f32 %v436, %v281
        %v439 = vlaneseq
        %v440 = vshrl.u32 %v439, 7
        %v441 = vsub.s32 0, %v440
        %v442 = vrot.slane %v437, %v441
        %v443 = vlaneseq
        %v444 = vshrl.u32 %v443, 7
        %v445 = vsub.s32 1, %v444
        %v446 = vrot.slane %v437, %v445
        %v449 = vadd.f32 %v424, %v442
        %v450 = vadd.f32 %v425, %v446
        %v451 = vstv %s231
        %v452 = vmul.f32 %v451, %v281
        %v454 = vlaneseq
        %v455 = vshrl.u32 %v454, 7
        %v456 = vsub.s32 0, %v455
        %v457 = vrot.slane %v452, %v456
        %v458 = vlaneseq
        %v459 = vshrl.u32 %v458, 7
        %v460 = vsub.s32 1, %v459
        %v461 = vrot.slane %v452, %v460
        %v464 = vadd.f32 %v429, %v457
        %v465 = vadd.f32 %v430, %v461
        %v466 = vstv %s258
        %v467 = vmul.f32 %v466, %v281
        %v469 = vlaneseq
        %v470 = vshrl.u32 %v469, 7
        %v471 = vsub.s32 0, %v470
        %v472 = vrot.slane %v467, %v471
        %v473 = vlaneseq
        %v474 = vshrl.u32 %v473, 7
        %v475 = vsub.s32 1, %v474
        %v476 = vrot.slane %v467, %v475
        %v479 = vadd.f32 %v434, %v472
        %v480 = vadd.f32 %v435, %v476
        %481 = vrot.lane.b32.xlu0 %v286, 127
        %v482 = vpop.permute.xlu0 %481
        %483 = vrot.lane.b32.xlu0 %v290, 127
        %v484 = vpop.permute.xlu0 %483
        %vm485 = vcmp.lt.s32.totalorder %v298, 127
        %v486 = vsel %vm485, %v482, %v484
        %v487 = vsel %vm485, %v484, %v482
        %s488 = scalar_lea.vmem [#allocation5], 5
        %v489 = vld [vmem:[%s488] ss:$8 sm:$0x3]
        %v491 = vlaneseq
        %v492 = vshrl.u32 %v491, 7
        %v493 = vsub.s32 0, %v492
        %v494 = vrot.slane %v489, %v493
        %v495 = vlaneseq
        %v496 = vshrl.u32 %v495, 7
        %v497 = vsub.s32 1, %v496
        %v498 = vrot.slane %v489, %v497
        %v501 = vmul.f32 %v486, %v494
        %v502 = vmul.f32 %v487, %v498
        %v503 = vstv %s205
        %v504 = vmul.f32 %v503, %v501
        %v505 = vmul.f32 %v503, %v502
        %v506 = vadd.f32 %v449, %v504
        %v507 = vadd.f32 %v450, %v505
        %v508 = vstv %s232
        %v509 = vmul.f32 %v508, %v501
        %v510 = vmul.f32 %v508, %v502
        %v511 = vadd.f32 %v464, %v509
        %v512 = vadd.f32 %v465, %v510
        %v513 = vstv %s259
        %v514 = vmul.f32 %v513, %v501
        %v515 = vmul.f32 %v513, %v502
        %v516 = vadd.f32 %v479, %v514
        %v517 = vadd.f32 %v480, %v515
        %518 = vrot.lane.b32.xlu0 %v286, 113
        %v519 = vpop.permute.xlu0 %518
        %520 = vrot.lane.b32.xlu0 %v290, 113
        %v521 = vpop.permute.xlu0 %520
        %vm522 = vcmp.lt.s32.totalorder %v298, 113
        %v523 = vsel %vm522, %v519, %v521
        %v524 = vsel %vm522, %v521, %v519
        %s525 = scalar_lea.vmem [#allocation5], 6
        %v526 = vld [vmem:[%s525] ss:$8 sm:$0x3]
        %v528 = vlaneseq
        %v529 = vshrl.u32 %v528, 7
        %v530 = vsub.s32 0, %v529
        %v531 = vrot.slane %v526, %v530
        %v532 = vlaneseq
        %v533 = vshrl.u32 %v532, 7
        %v534 = vsub.s32 1, %v533
        %v535 = vrot.slane %v526, %v534
        %v538 = vmul.f32 %v523, %v531
        %v539 = vmul.f32 %v524, %v535
        %v540 = vstv %s206
        %v541 = vmul.f32 %v540, %v538
        %v542 = vmul.f32 %v540, %v539
        %v543 = vadd.f32 %v506, %v541
        %v544 = vadd.f32 %v507, %v542
        %v545 = vstv %s233
        %v546 = vmul.f32 %v545, %v538
        %v547 = vmul.f32 %v545, %v539
        %v548 = vadd.f32 %v511, %v546
        %v549 = vadd.f32 %v512, %v547
        %v550 = vstv %s260
        %v551 = vmul.f32 %v550, %v538
        %v552 = vmul.f32 %v550, %v539
        %v553 = vadd.f32 %v516, %v551
        %v554 = vadd.f32 %v517, %v552
        %555 = vrot.lane.b32.xlu0 %v286, 112
        %v556 = vpop.permute.xlu0 %555
        %557 = vrot.lane.b32.xlu0 %v290, 112
        %v558 = vpop.permute.xlu0 %557
        %vm559 = vcmp.lt.s32.totalorder %v298, 112
        %v560 = vsel %vm559, %v556, %v558
        %v561 = vsel %vm559, %v558, %v556
        %s562 = scalar_lea.vmem [#allocation5], 7
        %v563 = vld [vmem:[%s562] ss:$8 sm:$0x3]
        %v565 = vlaneseq
        %v566 = vshrl.u32 %v565, 7
        %v567 = vsub.s32 0, %v566
        %v568 = vrot.slane %v563, %v567
        %v569 = vlaneseq
        %v570 = vshrl.u32 %v569, 7
        %v571 = vsub.s32 1, %v570
        %v572 = vrot.slane %v563, %v571
        %v575 = vmul.f32 %v560, %v568
        %v576 = vmul.f32 %v561, %v572
        %v577 = vstv %s207
        %v578 = vmul.f32 %v577, %v575
        %v579 = vmul.f32 %v577, %v576
        %v580 = vadd.f32 %v543, %v578
        %v581 = vadd.f32 %v544, %v579
        %v582 = vstv %s234
        %v583 = vmul.f32 %v582, %v575
        %v584 = vmul.f32 %v582, %v576
        %v585 = vadd.f32 %v548, %v583
        %v586 = vadd.f32 %v549, %v584
        %v587 = vstv %s261
        %v588 = vmul.f32 %v587, %v575
        %v589 = vmul.f32 %v587, %v576
        %v590 = vadd.f32 %v553, %v588
        %v591 = vadd.f32 %v554, %v589
        %592 = vrot.lane.b32.xlu0 %v286, 111
        %v593 = vpop.permute.xlu0 %592
        %594 = vrot.lane.b32.xlu0 %v290, 111
        %v595 = vpop.permute.xlu0 %594
        %vm596 = vcmp.lt.s32.totalorder %v298, 111
        %v597 = vsel %vm596, %v593, %v595
        %v598 = vsel %vm596, %v595, %v593
        %s599 = scalar_lea.vmem [#allocation5], 16
        %v600 = vld [vmem:[%s599] ss:$8 sm:$0x3]
        %v602 = vlaneseq
        %v603 = vshrl.u32 %v602, 7
        %v604 = vsub.s32 0, %v603
        %v605 = vrot.slane %v600, %v604
        %v606 = vlaneseq
        %v607 = vshrl.u32 %v606, 7
        %v608 = vsub.s32 1, %v607
        %v609 = vrot.slane %v600, %v608
        %v612 = vmul.f32 %v597, %v605
        %v613 = vmul.f32 %v598, %v609
        %v614 = vstv %s208
        %v615 = vmul.f32 %v614, %v612
        %v616 = vmul.f32 %v614, %v613
        %v617 = vadd.f32 %v580, %v615
        %v618 = vadd.f32 %v581, %v616
        %v619 = vstv %s235
        %v620 = vmul.f32 %v619, %v612
        %v621 = vmul.f32 %v619, %v613
        %v622 = vadd.f32 %v585, %v620
        %v623 = vadd.f32 %v586, %v621
        %v624 = vstv %s262
        %v625 = vmul.f32 %v624, %v612
        %v626 = vmul.f32 %v624, %v613
        %v627 = vadd.f32 %v590, %v625
        %v628 = vadd.f32 %v591, %v626
        %s629 = scalar_lea.vmem %s194, 1
        %v630 = vld [vmem:[%s629] ss:$4 sm:$0x3]
        %v632 = vlaneseq
        %v633 = vshrl.u32 %v632, 7
        %v634 = vsub.s32 0, %v633
        %v635 = vrot.slane %v630, %v634
        %v636 = vlaneseq
        %v637 = vshrl.u32 %v636, 7
        %v638 = vsub.s32 1, %v637
        %v639 = vrot.slane %v630, %v638
        %642 = vrot.lane.b32.xlu0 %v635, 17
        %v643 = vpop.permute.xlu0 %642
        %644 = vrot.lane.b32.xlu0 %v639, 17
        %v645 = vpop.permute.xlu0 %644
        %v646 = vsel %vm299, %v643, %v645
        %v647 = vsel %vm299, %v645, %v643
        %v648 = vmul.f32 %v647, %v307
        %v649 = vmul.f32 %v646, %v311
        %v650 = vstv %s209
        %v651 = vmul.f32 %v650, %v648
        %v652 = vmul.f32 %v650, %v649
        %v653 = vadd.f32 %v617, %v651
        %v654 = vadd.f32 %v618, %v652
        %v655 = vstv %s236
        %v656 = vmul.f32 %v655, %v648
        %v657 = vmul.f32 %v655, %v649
        %v658 = vadd.f32 %v622, %v656
        %v659 = vadd.f32 %v623, %v657
        %v660 = vstv %s263
        %v661 = vmul.f32 %v660, %v648
        %v662 = vmul.f32 %v660, %v649
        %v663 = vadd.f32 %v627, %v661
        %v664 = vadd.f32 %v628, %v662
        %665 = vrot.lane.b32.xlu0 %v635, 16
        %v666 = vpop.permute.xlu0 %665
        %667 = vrot.lane.b32.xlu0 %v639, 16
        %v668 = vpop.permute.xlu0 %667
        %v669 = vsel %vm329, %v666, %v668
        %v670 = vsel %vm329, %v668, %v666
        %v671 = vmul.f32 %v670, %v338
        %v672 = vmul.f32 %v669, %v342
        %v673 = vstv %s210
        %v674 = vmul.f32 %v673, %v671
        %v675 = vmul.f32 %v673, %v672
        %v676 = vadd.f32 %v653, %v674
        %v677 = vadd.f32 %v654, %v675
        %v678 = vstv %s237
        %v679 = vmul.f32 %v678, %v671
        %v680 = vmul.f32 %v678, %v672
        %v681 = vadd.f32 %v658, %v679
        %v682 = vadd.f32 %v659, %v680
        %v683 = vstv %s264
        %v684 = vmul.f32 %v683, %v671
        %v685 = vmul.f32 %v683, %v672
        %v686 = vadd.f32 %v663, %v684
        %v687 = vadd.f32 %v664, %v685
        %688 = vrot.lane.b32.xlu0 %v635, 15
        %v689 = vpop.permute.xlu0 %688
        %690 = vrot.lane.b32.xlu0 %v639, 15
        %v691 = vpop.permute.xlu0 %690
        %v692 = vsel %vm366, %v689, %v691
        %v693 = vsel %vm366, %v691, %v689
        %v694 = vmul.f32 %v693, %v375
        %v695 = vmul.f32 %v692, %v379
        %v696 = vstv %s211
        %v697 = vmul.f32 %v696, %v694
        %v698 = vmul.f32 %v696, %v695
        %v699 = vadd.f32 %v676, %v697
        %v700 = vadd.f32 %v677, %v698
        %v701 = vstv %s238
        %v702 = vmul.f32 %v701, %v694
        %v703 = vmul.f32 %v701, %v695
        %v704 = vadd.f32 %v681, %v702
        %v705 = vadd.f32 %v682, %v703
        %v706 = vstv %s265
        %v707 = vmul.f32 %v706, %v694
        %v708 = vmul.f32 %v706, %v695
        %v709 = vadd.f32 %v686, %v707
        %v710 = vadd.f32 %v687, %v708
        %711 = vrot.lane.b32.xlu0 %v635, 1
        %v712 = vpop.permute.xlu0 %711
        %713 = vrot.lane.b32.xlu0 %v639, 1
        %v714 = vpop.permute.xlu0 %713
        %v715 = vsel %vm403, %v712, %v714
        %v716 = vsel %vm403, %v714, %v712
        %v717 = vmul.f32 %v716, %v412
        %v718 = vmul.f32 %v715, %v416
        %v719 = vstv %s212
        %v720 = vmul.f32 %v719, %v717
        %v721 = vmul.f32 %v719, %v718
        %v722 = vadd.f32 %v699, %v720
        %v723 = vadd.f32 %v700, %v721
        %v724 = vstv %s239
        %v725 = vmul.f32 %v724, %v717
        %v726 = vmul.f32 %v724, %v718
        %v727 = vadd.f32 %v704, %v725
        %v728 = vadd.f32 %v705, %v726
        %v729 = vstv %s266
        %v730 = vmul.f32 %v729, %v717
        %v731 = vmul.f32 %v729, %v718
        %v732 = vadd.f32 %v709, %v730
        %v733 = vadd.f32 %v710, %v731
        %v734 = vstv %s213
        %v735 = vmul.f32 %v734, %v630
        %v737 = vlaneseq
        %v738 = vshrl.u32 %v737, 7
        %v739 = vsub.s32 0, %v738
        %v740 = vrot.slane %v735, %v739
        %v741 = vlaneseq
        %v742 = vshrl.u32 %v741, 7
        %v743 = vsub.s32 1, %v742
        %v744 = vrot.slane %v735, %v743
        %v747 = vadd.f32 %v722, %v740
        %v748 = vadd.f32 %v723, %v744
        %v749 = vstv %s240
        %v750 = vmul.f32 %v749, %v630
        %v752 = vlaneseq
        %v753 = vshrl.u32 %v752, 7
        %v754 = vsub.s32 0, %v753
        %v755 = vrot.slane %v750, %v754
        %v756 = vlaneseq
        %v757 = vshrl.u32 %v756, 7
        %v758 = vsub.s32 1, %v757
        %v759 = vrot.slane %v750, %v758
        %v762 = vadd.f32 %v727, %v755
        %v763 = vadd.f32 %v728, %v759
        %v764 = vstv %s267
        %v765 = vmul.f32 %v764, %v630
        %v767 = vlaneseq
        %v768 = vshrl.u32 %v767, 7
        %v769 = vsub.s32 0, %v768
        %v770 = vrot.slane %v765, %v769
        %v771 = vlaneseq
        %v772 = vshrl.u32 %v771, 7
        %v773 = vsub.s32 1, %v772
        %v774 = vrot.slane %v765, %v773
        %v777 = vadd.f32 %v732, %v770
        %v778 = vadd.f32 %v733, %v774
        %779 = vrot.lane.b32.xlu0 %v635, 127
        %v780 = vpop.permute.xlu0 %779
        %781 = vrot.lane.b32.xlu0 %v639, 127
        %v782 = vpop.permute.xlu0 %781
        %v783 = vsel %vm485, %v780, %v782
        %v784 = vsel %vm485, %v782, %v780
        %v785 = vmul.f32 %v783, %v494
        %v786 = vmul.f32 %v784, %v498
        %v787 = vstv %s214
        %v788 = vmul.f32 %v787, %v785
        %v789 = vmul.f32 %v787, %v786
        %v790 = vadd.f32 %v747, %v788
        %v791 = vadd.f32 %v748, %v789
        %v792 = vstv %s241
        %v793 = vmul.f32 %v792, %v785
        %v794 = vmul.f32 %v792, %v786
        %v795 = vadd.f32 %v762, %v793
        %v796 = vadd.f32 %v763, %v794
        %v797 = vstv %s268
        %v798 = vmul.f32 %v797, %v785
        %v799 = vmul.f32 %v797, %v786
        %v800 = vadd.f32 %v777, %v798
        %v801 = vadd.f32 %v778, %v799
        %802 = vrot.lane.b32.xlu0 %v635, 113
        %v803 = vpop.permute.xlu0 %802
        %804 = vrot.lane.b32.xlu0 %v639, 113
        %v805 = vpop.permute.xlu0 %804
        %v806 = vsel %vm522, %v803, %v805
        %v807 = vsel %vm522, %v805, %v803
        %v808 = vmul.f32 %v806, %v531
        %v809 = vmul.f32 %v807, %v535
        %v810 = vstv %s215
        %v811 = vmul.f32 %v810, %v808
        %v812 = vmul.f32 %v810, %v809
        %v813 = vadd.f32 %v790, %v811
        %v814 = vadd.f32 %v791, %v812
        %v815 = vstv %s242
        %v816 = vmul.f32 %v815, %v808
        %v817 = vmul.f32 %v815, %v809
        %v818 = vadd.f32 %v795, %v816
        %v819 = vadd.f32 %v796, %v817
        %v820 = vstv %s269
        %v821 = vmul.f32 %v820, %v808
        %v822 = vmul.f32 %v820, %v809
        %v823 = vadd.f32 %v800, %v821
        %v824 = vadd.f32 %v801, %v822
        %825 = vrot.lane.b32.xlu0 %v635, 112
        %v826 = vpop.permute.xlu0 %825
        %827 = vrot.lane.b32.xlu0 %v639, 112
        %v828 = vpop.permute.xlu0 %827
        %v829 = vsel %vm559, %v826, %v828
        %v830 = vsel %vm559, %v828, %v826
        %v831 = vmul.f32 %v829, %v568
        %v832 = vmul.f32 %v830, %v572
        %v833 = vstv %s216
        %v834 = vmul.f32 %v833, %v831
        %v835 = vmul.f32 %v833, %v832
        %v836 = vadd.f32 %v813, %v834
        %v837 = vadd.f32 %v814, %v835
        %v838 = vstv %s243
        %v839 = vmul.f32 %v838, %v831
        %v840 = vmul.f32 %v838, %v832
        %v841 = vadd.f32 %v818, %v839
        %v842 = vadd.f32 %v819, %v840
        %v843 = vstv %s270
        %v844 = vmul.f32 %v843, %v831
        %v845 = vmul.f32 %v843, %v832
        %v846 = vadd.f32 %v823, %v844
        %v847 = vadd.f32 %v824, %v845
        %848 = vrot.lane.b32.xlu0 %v635, 111
        %v849 = vpop.permute.xlu0 %848
        %850 = vrot.lane.b32.xlu0 %v639, 111
        %v851 = vpop.permute.xlu0 %850
        %v852 = vsel %vm596, %v849, %v851
        %v853 = vsel %vm596, %v851, %v849
        %v854 = vmul.f32 %v852, %v605
        %v855 = vmul.f32 %v853, %v609
        %v856 = vstv %s217
        %v857 = vmul.f32 %v856, %v854
        %v858 = vmul.f32 %v856, %v855
        %v859 = vadd.f32 %v836, %v857
        %v860 = vadd.f32 %v837, %v858
        %v861 = vstv %s244
        %v862 = vmul.f32 %v861, %v854
        %v863 = vmul.f32 %v861, %v855
        %v864 = vadd.f32 %v841, %v862
        %v865 = vadd.f32 %v842, %v863
        %v866 = vstv %s271
        %v867 = vmul.f32 %v866, %v854
        %v868 = vmul.f32 %v866, %v855
        %v869 = vadd.f32 %v846, %v867
        %v870 = vadd.f32 %v847, %v868
        %s871 = scalar_lea.vmem %s194, 2
        %v872 = vld [vmem:[%s871] ss:$4 sm:$0x3]
        %v874 = vlaneseq
        %v875 = vshrl.u32 %v874, 7
        %v876 = vsub.s32 0, %v875
        %v877 = vrot.slane %v872, %v876
        %v878 = vlaneseq
        %v879 = vshrl.u32 %v878, 7
        %v880 = vsub.s32 1, %v879
        %v881 = vrot.slane %v872, %v880
        %884 = vrot.lane.b32.xlu0 %v877, 17
        %v885 = vpop.permute.xlu0 %884
        %886 = vrot.lane.b32.xlu0 %v881, 17
        %v887 = vpop.permute.xlu0 %886
        %v888 = vsel %vm299, %v885, %v887
        %v889 = vsel %vm299, %v887, %v885
        %v890 = vmul.f32 %v889, %v307
        %v891 = vmul.f32 %v888, %v311
        %v892 = vstv %s218
        %v893 = vmul.f32 %v892, %v890
        %v894 = vmul.f32 %v892, %v891
        %v895 = vadd.f32 %v859, %v893
        %v896 = vadd.f32 %v860, %v894
        %v897 = vstv %s245
        %v898 = vmul.f32 %v897, %v890
        %v899 = vmul.f32 %v897, %v891
        %v900 = vadd.f32 %v864, %v898
        %v901 = vadd.f32 %v865, %v899
        %v902 = vstv %s272
        %v903 = vmul.f32 %v902, %v890
        %v904 = vmul.f32 %v902, %v891
        %v905 = vadd.f32 %v869, %v903
        %v906 = vadd.f32 %v870, %v904
        %907 = vrot.lane.b32.xlu0 %v877, 16
        %v908 = vpop.permute.xlu0 %907
        %909 = vrot.lane.b32.xlu0 %v881, 16
        %v910 = vpop.permute.xlu0 %909
        %v911 = vsel %vm329, %v908, %v910
        %v912 = vsel %vm329, %v910, %v908
        %v913 = vmul.f32 %v912, %v338
        %v914 = vmul.f32 %v911, %v342
        %v915 = vstv %s219
        %v916 = vmul.f32 %v915, %v913
        %v917 = vmul.f32 %v915, %v914
        %v918 = vadd.f32 %v895, %v916
        %v919 = vadd.f32 %v896, %v917
        %v920 = vstv %s246
        %v921 = vmul.f32 %v920, %v913
        %v922 = vmul.f32 %v920, %v914
        %v923 = vadd.f32 %v900, %v921
        %v924 = vadd.f32 %v901, %v922
        %v925 = vstv %s273
        %v926 = vmul.f32 %v925, %v913
        %v927 = vmul.f32 %v925, %v914
        %v928 = vadd.f32 %v905, %v926
        %v929 = vadd.f32 %v906, %v927
        %930 = vrot.lane.b32.xlu0 %v877, 15
        %v931 = vpop.permute.xlu0 %930
        %932 = vrot.lane.b32.xlu0 %v881, 15
        %v933 = vpop.permute.xlu0 %932
        %v934 = vsel %vm366, %v931, %v933
        %v935 = vsel %vm366, %v933, %v931
        %v936 = vmul.f32 %v935, %v375
        %v937 = vmul.f32 %v934, %v379
        %v938 = vstv %s220
        %v939 = vmul.f32 %v938, %v936
        %v940 = vmul.f32 %v938, %v937
        %v941 = vadd.f32 %v918, %v939
        %v942 = vadd.f32 %v919, %v940
        %v943 = vstv %s247
        %v944 = vmul.f32 %v943, %v936
        %v945 = vmul.f32 %v943, %v937
        %v946 = vadd.f32 %v923, %v944
        %v947 = vadd.f32 %v924, %v945
        %v948 = vstv %s274
        %v949 = vmul.f32 %v948, %v936
        %v950 = vmul.f32 %v948, %v937
        %v951 = vadd.f32 %v928, %v949
        %v952 = vadd.f32 %v929, %v950
        %953 = vrot.lane.b32.xlu0 %v877, 1
        %v954 = vpop.permute.xlu0 %953
        %955 = vrot.lane.b32.xlu0 %v881, 1
        %v956 = vpop.permute.xlu0 %955
        %v957 = vsel %vm403, %v954, %v956
        %v958 = vsel %vm403, %v956, %v954
        %v959 = vmul.f32 %v958, %v412
        %v960 = vmul.f32 %v957, %v416
        %v961 = vstv %s221
        %v962 = vmul.f32 %v961, %v959
        %v963 = vmul.f32 %v961, %v960
        %v964 = vadd.f32 %v941, %v962
        %v965 = vadd.f32 %v942, %v963
        %v966 = vstv %s248
        %v967 = vmul.f32 %v966, %v959
        %v968 = vmul.f32 %v966, %v960
        %v969 = vadd.f32 %v946, %v967
        %v970 = vadd.f32 %v947, %v968
        %v971 = vstv %s275
        %v972 = vmul.f32 %v971, %v959
        %v973 = vmul.f32 %v971, %v960
        %v974 = vadd.f32 %v951, %v972
        %v975 = vadd.f32 %v952, %v973
        %v976 = vstv %s222
        %v977 = vmul.f32 %v976, %v872
        %v979 = vlaneseq
        %v980 = vshrl.u32 %v979, 7
        %v981 = vsub.s32 0, %v980
        %v982 = vrot.slane %v977, %v981
        %v983 = vlaneseq
        %v984 = vshrl.u32 %v983, 7
        %v985 = vsub.s32 1, %v984
        %v986 = vrot.slane %v977, %v985
        %v989 = vadd.f32 %v964, %v982
        %v990 = vadd.f32 %v965, %v986
        %v991 = vstv %s249
        %v992 = vmul.f32 %v991, %v872
        %v994 = vlaneseq
        %v995 = vshrl.u32 %v994, 7
        %v996 = vsub.s32 0, %v995
        %v997 = vrot.slane %v992, %v996
        %v998 = vlaneseq
        %v999 = vshrl.u32 %v998, 7
        %v1000 = vsub.s32 1, %v999
        %v1001 = vrot.slane %v992, %v1000
        %v1004 = vadd.f32 %v969, %v997
        %v1005 = vadd.f32 %v970, %v1001
        %v1006 = vstv %s276
        %v1007 = vmul.f32 %v1006, %v872
        %v1009 = vlaneseq
        %v1010 = vshrl.u32 %v1009, 7
        %v1011 = vsub.s32 0, %v1010
        %v1012 = vrot.slane %v1007, %v1011
        %v1013 = vlaneseq
        %v1014 = vshrl.u32 %v1013, 7
        %v1015 = vsub.s32 1, %v1014
        %v1016 = vrot.slane %v1007, %v1015
        %v1019 = vadd.f32 %v974, %v1012
        %v1020 = vadd.f32 %v975, %v1016
        %1021 = vrot.lane.b32.xlu0 %v877, 127
        %v1022 = vpop.permute.xlu0 %1021
        %1023 = vrot.lane.b32.xlu0 %v881, 127
        %v1024 = vpop.permute.xlu0 %1023
        %v1025 = vsel %vm485, %v1022, %v1024
        %v1026 = vsel %vm485, %v1024, %v1022
        %v1027 = vmul.f32 %v1025, %v494
        %v1028 = vmul.f32 %v1026, %v498
        %v1029 = vstv %s223
        %v1030 = vmul.f32 %v1029, %v1027
        %v1031 = vmul.f32 %v1029, %v1028
        %v1032 = vadd.f32 %v989, %v1030
        %v1033 = vadd.f32 %v990, %v1031
        %v1034 = vstv %s250
        %v1035 = vmul.f32 %v1034, %v1027
        %v1036 = vmul.f32 %v1034, %v1028
        %v1037 = vadd.f32 %v1004, %v1035
        %v1038 = vadd.f32 %v1005, %v1036
        %v1039 = vstv %s277
        %v1040 = vmul.f32 %v1039, %v1027
        %v1041 = vmul.f32 %v1039, %v1028
        %v1042 = vadd.f32 %v1019, %v1040
        %v1043 = vadd.f32 %v1020, %v1041
        %1044 = vrot.lane.b32.xlu0 %v877, 113
        %v1045 = vpop.permute.xlu0 %1044
        %1046 = vrot.lane.b32.xlu0 %v881, 113
        %v1047 = vpop.permute.xlu0 %1046
        %v1048 = vsel %vm522, %v1045, %v1047
        %v1049 = vsel %vm522, %v1047, %v1045
        %v1050 = vmul.f32 %v1048, %v531
        %v1051 = vmul.f32 %v1049, %v535
        %v1052 = vstv %s224
        %v1053 = vmul.f32 %v1052, %v1050
        %v1054 = vmul.f32 %v1052, %v1051
        %v1055 = vadd.f32 %v1032, %v1053
        %v1056 = vadd.f32 %v1033, %v1054
        %v1057 = vstv %s251
        %v1058 = vmul.f32 %v1057, %v1050
        %v1059 = vmul.f32 %v1057, %v1051
        %v1060 = vadd.f32 %v1037, %v1058
        %v1061 = vadd.f32 %v1038, %v1059
        %v1062 = vstv %s278
        %v1063 = vmul.f32 %v1062, %v1050
        %v1064 = vmul.f32 %v1062, %v1051
        %v1065 = vadd.f32 %v1042, %v1063
        %v1066 = vadd.f32 %v1043, %v1064
        %1067 = vrot.lane.b32.xlu0 %v877, 112
        %v1068 = vpop.permute.xlu0 %1067
        %1069 = vrot.lane.b32.xlu0 %v881, 112
        %v1070 = vpop.permute.xlu0 %1069
        %v1071 = vsel %vm559, %v1068, %v1070
        %v1072 = vsel %vm559, %v1070, %v1068
        %v1073 = vmul.f32 %v1071, %v568
        %v1074 = vmul.f32 %v1072, %v572
        %v1075 = vstv %s225
        %v1076 = vmul.f32 %v1075, %v1073
        %v1077 = vmul.f32 %v1075, %v1074
        %v1078 = vadd.f32 %v1055, %v1076
        %v1079 = vadd.f32 %v1056, %v1077
        %v1080 = vstv %s252
        %v1081 = vmul.f32 %v1080, %v1073
        %v1082 = vmul.f32 %v1080, %v1074
        %v1083 = vadd.f32 %v1060, %v1081
        %v1084 = vadd.f32 %v1061, %v1082
        %v1085 = vstv %s279
        %v1086 = vmul.f32 %v1085, %v1073
        %v1087 = vmul.f32 %v1085, %v1074
        %v1088 = vadd.f32 %v1065, %v1086
        %v1089 = vadd.f32 %v1066, %v1087
        %1090 = vrot.lane.b32.xlu0 %v877, 111
        %v1091 = vpop.permute.xlu0 %1090
        %1092 = vrot.lane.b32.xlu0 %v881, 111
        %v1093 = vpop.permute.xlu0 %1092
        %v1094 = vsel %vm596, %v1091, %v1093
        %v1095 = vsel %vm596, %v1093, %v1091
        %v1096 = vmul.f32 %v1094, %v605
        %v1097 = vmul.f32 %v1095, %v609
        %v1098 = vstv %s226
        %v1099 = vmul.f32 %v1098, %v1096
        %v1100 = vmul.f32 %v1098, %v1097
        %v1101 = vadd.f32 %v1078, %v1099
        %v1102 = vadd.f32 %v1079, %v1100
        %v1103 = vstv %s253
        %v1104 = vmul.f32 %v1103, %v1096
        %v1105 = vmul.f32 %v1103, %v1097
        %v1106 = vadd.f32 %v1083, %v1104
        %v1107 = vadd.f32 %v1084, %v1105
        %v1108 = vstv %s280
        %v1109 = vmul.f32 %v1108, %v1096
        %v1110 = vmul.f32 %v1108, %v1097
        %v1111 = vadd.f32 %v1088, %v1109
        %v1112 = vadd.f32 %v1089, %v1110
        %v1115 = vcombine.low %v1101, %v1102
        %v1117 = vunpack.c.l.s4 1966171168
        %v1118 = vunpack.c.0.s8 %v1117
        %v1119 = vlaneseq
        %v1120 = vshrl.u32 %v1119, 7
        %v1121 = vsub.s32 %v1118, %v1120
        %v1122 = vrot.slane %v1115, %v1121
        %v1124 = vunpack.c.l.s4 1966171168
        %v1125 = vunpack.c.0.s8 %v1124
        %v1126 = vlaneseq
        %v1127 = vshrl.u32 %v1126, 7
        %v1128 = vsub.s32 %v1125, %v1127
        %v1129 = vrot.slane %v1122, %v1128
        %v1131 = vlaneseq
        %vm1132 = vcmp.ge.s32.totalorder %v1131, 0
        %vm1133 = vcmp.lt.s32.totalorder %v1131, 256
        %vm1134 = vmand %vm1132, %vm1133
        %1135 = vst.msk [vmem:[%s199] ss:$4 sm:$0x3] %vm1134, %v1129
        %v1138 = vcombine.low %v1106, %v1107
        %v1140 = vunpack.c.l.s4 1966171168
        %v1141 = vunpack.c.0.s8 %v1140
        %v1142 = vlaneseq
        %v1143 = vshrl.u32 %v1142, 7
        %v1144 = vsub.s32 %v1141, %v1143
        %v1145 = vrot.slane %v1138, %v1144
        %v1147 = vunpack.c.l.s4 1966171168
        %v1148 = vunpack.c.0.s8 %v1147
        %v1149 = vlaneseq
        %v1150 = vshrl.u32 %v1149, 7
        %v1151 = vsub.s32 %v1148, %v1150
        %v1152 = vrot.slane %v1145, %v1151
        %s1154 = scalar_lea.vmem %s199, 1
        %1155 = vst.msk [vmem:[%s1154] ss:$4 sm:$0x3] %vm1134, %v1152
        %v1158 = vcombine.low %v1111, %v1112
        %v1160 = vunpack.c.l.s4 1966171168
        %v1161 = vunpack.c.0.s8 %v1160
        %v1162 = vlaneseq
        %v1163 = vshrl.u32 %v1162, 7
        %v1164 = vsub.s32 %v1161, %v1163
        %v1165 = vrot.slane %v1158, %v1164
        %v1167 = vunpack.c.l.s4 1966171168
        %v1168 = vunpack.c.0.s8 %v1167
        %v1169 = vlaneseq
        %v1170 = vshrl.u32 %v1169, 7
        %v1171 = vsub.s32 %v1168, %v1170
        %v1172 = vrot.slane %v1165, %v1171
        %s1174 = scalar_lea.vmem %s199, 2
        %1175 = vst.msk [vmem:[%s1174] ss:$4 sm:$0x3] %vm1134, %v1172
        %p1176 = scmp.lt.s32.totalorder %s16, 1
        %s1177 = scalar_select %p1176, %s16, 1
        %s1178 = smul.addr %s1177, 2
        %s1179 = smul.addr %s1178, 4
        %s1180 = scalar_lea.vmem %s3, %s1179
        // Predicated region
        $region41: #{tpu_custom_call.1} parent=31 // pred_check
          %p1181 = pneg %p102
        $region42: #{tpu_custom_call.1} parent=31 // pred_check_branch
          %1183 = sbr.rel (%p1181) target = $region44
        $region43: #{tpu_custom_call.1} parent=31 // pred_region
          _
        $region44: #{tpu_custom_call.1} parent=31 // pred_fallthru
          _
      $region32: #{tpu_custom_call.1} parent=5 // pred_fallthru
        _
      %p1184 = scmp.le.s32.totalorder 2, %s11
      // Predicated region
      $region45: #{tpu_custom_call.1} parent=5 // pred_check
        %p1185 = pneg %p1184
      $region46: #{tpu_custom_call.1} parent=5 // pred_check_branch
        %1187 = sbr.rel (%p1185) target = $region48
      $region47: #{tpu_custom_call.1} parent=5 // pred_region
        %s1188 = ssub.s32 %s11, 2
        // Predicated region
        $region49: #{tpu_custom_call.1} parent=47 // pred_check
          %p1189 = pneg %p108
        $region50: #{tpu_custom_call.1} parent=47 // pred_check_branch
          %1191 = sbr.rel (%p1189) target = $region52
        $region51: #{tpu_custom_call.1} parent=47 // pred_region
          %p1192 = scmp.lt.s32.totalorder %s17, 1
          %s1193 = scalar_select %p1192, %s17, 1
          %s1194 = smul.addr %s1193, 2
          %s1195 = smul.addr %s1194, 4
          %s1196 = scalar_lea.vmem %s3, %s1195
        $region52: #{tpu_custom_call.1} parent=47 // pred_fallthru
          _
      $region48: #{tpu_custom_call.1} parent=5 // pred_fallthru
        _
    $region6: #{tpu_custom_call.1} parent=1 // loop_footer
      %s15 = sadd.s32 1, %s11
    $region7: #{tpu_custom_call.1} parent=1 // loop_footer_branch
      %10 = sbr.rel target = $region3
    $region8: #{tpu_custom_call.1} parent=1 // loop_exit
      _
    %1197 = vsyncpa [#allocation3], 1
    %s1198 = scalar_lea.sflag [#allocation3], 1
    %1199 = vsyncpa %s1198, 1
    %1200 = vsyncpa [#allocation4], 1
    %s1201 = scalar_lea.sflag [#allocation4], 1
    %1202 = vsyncpa %s1201, 1

</llo_original>
